<compile_context>
chip_gen: v6e
topology: v6e:2x2x1
jax: 0.10.0
libtpu: 0.0.40
codegen_flags: <defaults>
</compile_context>

<pallas_src>
import math
from functools import partial

import jax
import jax.numpy as jnp
from jax.experimental import pallas as pl
from jax.experimental.pallas import tpu as pltpu


# ----------------------------- Pallas kernels --------------------------------

def linear_kernel(x_ref, wt_ref, b_ref, o_ref):
    # o = x @ W^T + b   (wt is pre-transposed W^T, bf16; accumulation in f32)
    o_ref[...] = jnp.dot(x_ref[...].astype(jnp.bfloat16), wt_ref[...],
                         preferred_element_type=jnp.float32) + b_ref[...]


def prologue_kernel(tpe_ref, txt_ref, x2d_ref,
                    tw1_ref, tb1_ref, tw2_ref, tb2_ref,
                    txw_ref, txb_ref, pw_ref, pb_ref,
                    pe0_ref, pet_ref,
                    emb_ref, xemb_ref):
    # Fused: TimestepEmbedder MLP + embed_text + InputProcess.poseEmbedding + PE add.
    # TimestepEmbedder: Linear -> SiLU -> Linear on gathered step-PE rows.
    h = jnp.dot(tpe_ref[...].astype(jnp.bfloat16), tw1_ref[...],
                preferred_element_type=jnp.float32) + tb1_ref[...]
    h = h * jax.nn.sigmoid(h)
    t_emb = jnp.dot(h.astype(jnp.bfloat16), tw2_ref[...],
                    preferred_element_type=jnp.float32) + tb2_ref[...]
    # embed_text (mask_cond is identity in eval / cond_mask_prob=0)
    txt_emb = jnp.dot(txt_ref[...].astype(jnp.bfloat16), txw_ref[...],
                      preferred_element_type=jnp.float32) + txb_ref[...]
    # sequence position 0 (cond token): text + step embedding, plus pe[0]
    emb_ref[...] = t_emb + txt_emb + pe0_ref[...]
    # poseEmbedding on all (batch, frame) rows at once, plus pe[1:] (pre-tiled)
    xe = jnp.dot(x2d_ref[...].astype(jnp.bfloat16), pw_ref[...],
                 preferred_element_type=jnp.float32) + pb_ref[...]
    xemb_ref[...] = xe + pet_ref[...]


def _layernorm(x, g, b, eps=1e-5):
    # one-pass stats: E[x], E[x^2]  (halves the cross-lane reductions)
    m = jnp.mean(x, axis=-1, keepdims=True)
    m2 = jnp.mean(x * x, axis=-1, keepdims=True)
    var = m2 - m * m
    return (x - m) * jax.lax.rsqrt(var + eps) * g + b


def encoder_layer_kernel(x_ref, am_ref, wqkv_ref, bqkv_ref, wo3_ref, bo_ref,
                         ln1w_ref, ln1b_ref, wff1_ref, bff1_ref,
                         wff2_ref, bff2_ref, ln2w_ref, ln2b_ref,
                         o_ref, *, num_heads):
    # One post-norm nn.TransformerEncoderLayer (gelu), one batch element per grid step.
    x = x_ref[...]                       # (S, D) f32
    am = am_ref[...]                     # (1, S) additive key-padding mask (finite)
    S, D = x.shape
    H = num_heads
    hd = D // H
    scale = 1.0 / math.sqrt(hd)

    # --- fused QKV projection: single (S, D) @ (D, 3D) matmul, bf16 in / f32 acc ---
    qkv = jnp.dot(x.astype(jnp.bfloat16), wqkv_ref[...],
                  preferred_element_type=jnp.float32) + bqkv_ref[...]   # (S, 3D)

    def split_heads(t):                  # (S, D) -> (H, S, hd), head-leading batch dim
        return jnp.stack([t[:, h * hd:(h + 1) * hd] for h in range(H)], axis=0)

    q = split_heads(qkv[:, :D])
    k = split_heads(qkv[:, D:2 * D])
    v = split_heads(qkv[:, 2 * D:])

    # --- batched attention: one dot_general for scores, one for context ---
    s = jnp.einsum('hqd,hkd->hqk', q, k,
                   preferred_element_type=jnp.float32) * scale          # (H, S, S)
    s = s + am[None, :, :]               # mask padded keys (broadcast over heads/queries)
    s = s - jnp.max(s, axis=-1, keepdims=True)
    p = jnp.exp(s)
    p = p * pl.reciprocal(jnp.sum(p, axis=-1, keepdims=True), approx=True)
    ctx = jnp.einsum('hqk,hkd->hqd', p, v,
                     preferred_element_type=jnp.float32)                # (H, S, hd)

    # --- output projection folded per head (wo3 = W_o^T reshaped (H, hd, D) at init),
    #     summed over heads -> avoids a lane-dim concatenate of head outputs ---
    oh = jnp.einsum('hqd,hde->hqe', ctx.astype(jnp.bfloat16), wo3_ref[...],
                    preferred_element_type=jnp.float32)                 # (H, S, D)
    attn = oh[0]
    for h in range(1, H):
        attn = attn + oh[h]
    attn = attn + bo_ref[...]

    x = _layernorm(x + attn, ln1w_ref[...], ln1b_ref[...])

    # --- feed-forward (exact erf GELU, like torch F.gelu default) ---
    f = jnp.dot(x.astype(jnp.bfloat16), wff1_ref[...],
                preferred_element_type=jnp.float32) + bff1_ref[...]
    f = 0.5 * f * (1.0 + jax.lax.erf(f * (1.0 / math.sqrt(2.0))))
    f = jnp.dot(f.astype(jnp.bfloat16), wff2_ref[...],
                preferred_element_type=jnp.float32) + bff2_ref[...]
    x = _layernorm(x + f, ln2w_ref[...], ln2b_ref[...])
    o_ref[...] = x


# ------------------------------ call wrappers ---------------------------------

_VMEM = pl.BlockSpec(memory_space=pltpu.MemorySpace.VMEM)


def encoder_layer(x_bsd, add_mask, lp, num_heads):
    B, S, D = x_bsd.shape
    F = lp['ff1_wt'].shape[1]
    H = num_heads
    hd = D // H
    kern = partial(encoder_layer_kernel, num_heads=num_heads)

    def resident(shape):
        # full-array block, constant index -> fetched once, resident across the grid
        n = len(shape)
        return pl.BlockSpec(shape, lambda b, n=n: (0,) * n)

    in_specs = [
        pl.BlockSpec((None, S, D), lambda b: (b, 0, 0)),   # x, one batch per grid step
        pl.BlockSpec((None, 1, S), lambda b: (b, 0, 0)),   # additive key-padding mask
        resident((D, 3 * D)), resident((1, 3 * D)),        # qkv projection
        resident((H, hd, D)), resident((1, D)),            # out projection (per-head) + bias
        resident((1, D)), resident((1, D)),                # ln1
        resident((D, F)), resident((1, F)),                # ff1
        resident((F, D)), resident((1, D)),                # ff2
        resident((1, D)), resident((1, D)),                # ln2
    ]
    return pl.pallas_call(
        kern,
        out_shape=jax.ShapeDtypeStruct((B, S, D), jnp.float32),
        grid=(B,),
        in_specs=in_specs,
        out_specs=pl.BlockSpec((None, S, D), lambda b: (b, 0, 0)),
        compiler_params=pltpu.CompilerParams(dimension_semantics=("parallel",)),
    )(x_bsd, add_mask,
      lp['in_proj_wt'], lp['in_proj_b'],
      lp['out_w3'], lp['out_b'],
      lp['ln1_w'], lp['ln1_b'],
      lp['ff1_wt'], lp['ff1_b'],
      lp['ff2_wt'], lp['ff2_b'],
      lp['ln2_w'], lp['ln2_b'])


# ------------------------------ params & buffers -------------------------------

def make_pe(max_len, d):
    position = jnp.arange(max_len, dtype=jnp.float32)[:, None]
    div_term = jnp.exp(jnp.arange(0, d, 2, dtype=jnp.float32) * (-math.log(10000.0) / d))
    pe = jnp.zeros((max_len, d), jnp.float32)
    pe = pe.at[:, 0::2].set(jnp.sin(position * div_term))
    pe = pe.at[:, 1::2].set(jnp.cos(position * div_term))
    return pe[:, None, :]                                   # (max_len, 1, d)


def init_params(key, cfg):
    D, F = cfg['latent_dim'], cfg['ff_size']
    IF, C, L, H = cfg['input_feats'], cfg['clip_dim'], cfg['num_layers'], cfg['num_heads']
    hd = D // H
    keys = iter(jax.random.split(key, 128))

    def w(shape, scale=0.05):
        return scale * jax.random.normal(next(keys), shape, dtype=jnp.float32)

    def bf16(a):
        return a.astype(jnp.bfloat16)

    params = {
        # weights pre-transposed (x @ W^T form) once, stored bf16 for the MXU
        'pose_wt': bf16(w((D, IF)).T), 'pose_b': w((1, D)),      # InputProcess.poseEmbedding
        'text_wt': bf16(w((D, C)).T),  'text_b': w((1, D)),      # embed_text
        'time_w1t': bf16(w((D, D)).T), 'time_b1': w((1, D)),     # TimestepEmbedder MLP
        'time_w2t': bf16(w((D, D)).T), 'time_b2': w((1, D)),
        'final_wt': bf16(w((IF, D)).T), 'final_b': w((1, IF)),   # OutputProcess.poseFinal
        'seq_pe': make_pe(1000, D),
        'step_pe': make_pe(max(1000, cfg['diffusion_steps']), D),
        'layers': [],
    }
    for _ in range(L):
        Wqkv, Wo = w((3 * D, D)), w((D, D))
        W1, W2 = w((F, D)), w((D, F))
        params['layers'].append({
            'in_proj_wt': bf16(Wqkv.T),                 # (D, 3D)
            'in_proj_b': w((1, 3 * D)),
            'out_w3': bf16(Wo.T.reshape(H, hd, D)),     # W_o^T split per head -> (H, hd, D)
            'out_b': w((1, D)),
            'ln1_w': jnp.ones((1, D), jnp.float32), 'ln1_b': jnp.zeros((1, D), jnp.float32),
            'ff1_wt': bf16(W1.T), 'ff1_b': w((1, F)),
            'ff2_wt': bf16(W2.T), 'ff2_b': w((1, D)),
            'ln2_w': jnp.ones((1, D), jnp.float32), 'ln2_b': jnp.zeros((1, D), jnp.float32),
        })
    return params


# ------------------------------ MDM forward ------------------------------------

def mdm_forward(params, cfg, x, timesteps, text_embed, valid_mask):
    """x: [bs, njoints, nfeats, nframes]; timesteps: [bs] int; text_embed: [1, bs, clip_dim];
    valid_mask: [bs, 1, 1, max_frames] bool (True = valid frame)."""
    bs, nj, nf, nframes = x.shape
    D, H, C = cfg['latent_dim'], cfg['num_heads'], cfg['clip_dim']
    IF = nj * nf
    T = nframes
    S = T + 1

    # ---------------- glue (pure layout / gathers only) ----------------
    tpe = params['step_pe'][timesteps, 0, :]                   # (bs, D) timestep-PE gather
    txt = text_embed.reshape(bs, C)                            # y['text_embed']
    x2d = jnp.transpose(x, (0, 3, 1, 2)).reshape(bs * T, IF)   # rows ordered (batch, frame)
    pe = params['seq_pe'][:S, 0, :]                            # (S, D)
    pe0 = pe[:1]                                               # (1, D) for the cond token
    pet = jnp.tile(pe[1:], (bs, 1))                            # (bs*T, D): row (b,t) -> pe[t+1]

    # ---- fused prologue: timestep MLP + text embed + pose embed + PE add (one call) ----
    emb, xemb = pl.pallas_call(
        prologue_kernel,
        out_shape=(jax.ShapeDtypeStruct((bs, D), jnp.float32),
                   jax.ShapeDtypeStruct((bs * T, D), jnp.float32)),
        in_specs=[_VMEM] * 13,
        out_specs=(_VMEM, _VMEM),
    )(tpe, txt, x2d,
      params['time_w1t'], params['time_b1'], params['time_w2t'], params['time_b2'],
      params['text_wt'], params['text_b'], params['pose_wt'], params['pose_b'],
      pe0, pet)

    # xseq = [cond token | frame tokens], batch-first (B, S, D)
    h = jnp.concatenate([emb[:, None, :], xemb.reshape(bs, T, D)], axis=1)

    # additive key-padding mask: finite sentinel (step token is never masked)
    frames_mask = jnp.logical_not(valid_mask[..., :T].reshape(bs, T))
    key_pad = jnp.concatenate([jnp.zeros((bs, 1), dtype=bool), frames_mask], axis=1)
    add_mask = jnp.where(key_pad, -1e30, 0.0).astype(jnp.float32).reshape(bs, 1, S)

    # ---------------- transformer encoder stack (post-norm, gelu) ----------------
    for lp in params['layers']:
        h = encoder_layer(h, add_mask, lp, H)

    # ---------------- OutputProcess (drop cond token, pose projection) ----------------
    out_tok = h[:, 1:, :].reshape(bs * T, D)
    out2d = pl.pallas_call(
        linear_kernel,
        out_shape=jax.ShapeDtypeStruct((bs * T, IF), jnp.float32),
        in_specs=[_VMEM] * 3,
        out_specs=_VMEM,
    )(out_tok, params['final_wt'], params['final_b'])
    out = out2d.reshape(bs, T, nj, nf)
    return jnp.transpose(out, (0, 2, 3, 1))                    # (bs, nj, nf, nframes)


# ----------------------------------- main ---------------------------------------

if __name__ == "__main__":
    cfg = dict(njoints=4, nfeats=4, latent_dim=32, ff_size=64,
               num_layers=2, num_heads=4, clip_dim=16, diffusion_steps=1000)
    cfg['input_feats'] = cfg['njoints'] * cfg['nfeats']

    key = jax.random.PRNGKey(0)
    kp, kx, kt = jax.random.split(key, 3)
    params = init_params(kp, cfg)

    bs, nframes = 2, 8
    x = jax.random.normal(kx, (bs, cfg['njoints'], cfg['nfeats'], nframes), jnp.float32)
    timesteps = jnp.array([17, 503], dtype=jnp.int32)
    text_embed = jax.random.normal(kt, (1, bs, cfg['clip_dim']), jnp.float32)  # y['text_embed']
    valid_mask = jnp.ones((bs, 1, 1, nframes), dtype=bool).at[1, 0, 0, 6:].set(False)

    fwd = jax.jit(lambda p, xx, tt, te, vm: mdm_forward(p, cfg, xx, tt, te, vm))
    out = jax.block_until_ready(fwd(params, x, timesteps, text_embed, valid_mask))
    assert out.shape == (bs, cfg['njoints'], cfg['nfeats'], nframes), out.shape
    assert bool(jnp.all(jnp.isfinite(out)))
    print("KERNEL_OK")
</pallas_src>

<mosaic_0001>
module attributes {stable_mosaic.version = 11 : i64} {
  func.func @prologue_kernel(%arg0: memref<2x32xf32, #tpu.memory_space<vmem>>, %arg1: memref<2x16xf32, #tpu.memory_space<vmem>>, %arg2: memref<16x16xf32, #tpu.memory_space<vmem>>, %arg3: memref<32x32xbf16, #tpu.memory_space<vmem>>, %arg4: memref<1x32xf32, #tpu.memory_space<vmem>>, %arg5: memref<32x32xbf16, #tpu.memory_space<vmem>>, %arg6: memref<1x32xf32, #tpu.memory_space<vmem>>, %arg7: memref<16x32xbf16, #tpu.memory_space<vmem>>, %arg8: memref<1x32xf32, #tpu.memory_space<vmem>>, %arg9: memref<16x32xbf16, #tpu.memory_space<vmem>>, %arg10: memref<1x32xf32, #tpu.memory_space<vmem>>, %arg11: memref<1x32xf32, #tpu.memory_space<vmem>>, %arg12: memref<16x32xf32, #tpu.memory_space<vmem>>, %arg13: memref<2x32xf32, #tpu.memory_space<vmem>>, %arg14: memref<16x32xf32, #tpu.memory_space<vmem>>) attributes {dimension_semantics = [], scalar_prefetch = 0 : i64, scratch_operands = 0 : i64, tpu.core_type = #tpu.core_type<tc>} {
    %c0 = arith.constant 0 : index
    %c0_0 = arith.constant 0 : index
    %0 = vector.load %arg0[%c0, %c0_0] : memref<2x32xf32, #tpu.memory_space<vmem>>, vector<2x32xf32>
    %1 = arith.truncf %0 : vector<2x32xf32> to vector<2x32xbf16>
    %c0_1 = arith.constant 0 : index
    %c0_2 = arith.constant 0 : index
    %2 = vector.load %arg3[%c0_1, %c0_2] : memref<32x32xbf16, #tpu.memory_space<vmem>>, vector<32x32xbf16>
    %cst = arith.constant dense<0.000000e+00> : vector<2x32xf32>
    %3 = tpu.matmul %1, %2, %cst {dimension_numbers = #tpu.dot_dimension_numbers<[1], [0], [0], [1], [0, 0, 1, 1], [], []>} : vector<2x32xbf16>, vector<32x32xbf16>, vector<2x32xf32> -> vector<2x32xf32>
    %c0_3 = arith.constant 0 : index
    %c0_4 = arith.constant 0 : index
    %4 = vector.load %arg4[%c0_3, %c0_4] : memref<1x32xf32, #tpu.memory_space<vmem>>, vector<1x32xf32>
    %5 = vector.broadcast %4 : vector<1x32xf32> to vector<2x32xf32>
    %6 = arith.addf %3, %5 : vector<2x32xf32>
    %7 = arith.negf %6 : vector<2x32xf32>
    %8 = math.exp %7 : vector<2x32xf32>
    %cst_5 = arith.constant 1.000000e+00 : f32
    %9 = vector.broadcast %cst_5 : f32 to vector<2x32xf32>
    %10 = arith.addf %9, %8 : vector<2x32xf32>
    %11 = arith.divf %9, %10 : vector<2x32xf32>
    %12 = arith.mulf %6, %11 : vector<2x32xf32>
    %13 = arith.truncf %12 : vector<2x32xf32> to vector<2x32xbf16>
    %c0_6 = arith.constant 0 : index
    %c0_7 = arith.constant 0 : index
    %14 = vector.load %arg5[%c0_6, %c0_7] : memref<32x32xbf16, #tpu.memory_space<vmem>>, vector<32x32xbf16>
    %cst_8 = arith.constant dense<0.000000e+00> : vector<2x32xf32>
    %15 = tpu.matmul %13, %14, %cst_8 {dimension_numbers = #tpu.dot_dimension_numbers<[1], [0], [0], [1], [0, 0, 1, 1], [], []>} : vector<2x32xbf16>, vector<32x32xbf16>, vector<2x32xf32> -> vector<2x32xf32>
    %c0_9 = arith.constant 0 : index
    %c0_10 = arith.constant 0 : index
    %16 = vector.load %arg6[%c0_9, %c0_10] : memref<1x32xf32, #tpu.memory_space<vmem>>, vector<1x32xf32>
    %17 = vector.broadcast %16 : vector<1x32xf32> to vector<2x32xf32>
    %18 = arith.addf %15, %17 : vector<2x32xf32>
    %c0_11 = arith.constant 0 : index
    %c0_12 = arith.constant 0 : index
    %19 = vector.load %arg1[%c0_11, %c0_12] : memref<2x16xf32, #tpu.memory_space<vmem>>, vector<2x16xf32>
    %20 = arith.truncf %19 : vector<2x16xf32> to vector<2x16xbf16>
    %c0_13 = arith.constant 0 : index
    %c0_14 = arith.constant 0 : index
    %21 = vector.load %arg7[%c0_13, %c0_14] : memref<16x32xbf16, #tpu.memory_space<vmem>>, vector<16x32xbf16>
    %cst_15 = arith.constant dense<0.000000e+00> : vector<2x32xf32>
    %22 = tpu.matmul %20, %21, %cst_15 {dimension_numbers = #tpu.dot_dimension_numbers<[1], [0], [0], [1], [0, 0, 1, 1], [], []>} : vector<2x16xbf16>, vector<16x32xbf16>, vector<2x32xf32> -> vector<2x32xf32>
    %c0_16 = arith.constant 0 : index
    %c0_17 = arith.constant 0 : index
    %23 = vector.load %arg8[%c0_16, %c0_17] : memref<1x32xf32, #tpu.memory_space<vmem>>, vector<1x32xf32>
    %24 = vector.broadcast %23 : vector<1x32xf32> to vector<2x32xf32>
    %25 = arith.addf %22, %24 : vector<2x32xf32>
    %26 = arith.addf %18, %25 : vector<2x32xf32>
    %c0_18 = arith.constant 0 : index
    %c0_19 = arith.constant 0 : index
    %27 = vector.load %arg11[%c0_18, %c0_19] : memref<1x32xf32, #tpu.memory_space<vmem>>, vector<1x32xf32>
    %28 = vector.broadcast %27 : vector<1x32xf32> to vector<2x32xf32>
    %29 = arith.addf %26, %28 : vector<2x32xf32>
    %c0_20 = arith.constant 0 : index
    %c0_21 = arith.constant 0 : index
    %30 = vector.load %arg13[%c0_20, %c0_21] : memref<2x32xf32, #tpu.memory_space<vmem>>, vector<2x32xf32>
    tpu.vector_store %arg13[%c0_20, %c0_21], %29 {strides = array<i32>} : memref<2x32xf32, #tpu.memory_space<vmem>>, vector<2x32xf32>,
    %c0_22 = arith.constant 0 : index
    %c0_23 = arith.constant 0 : index
    %31 = vector.load %arg2[%c0_22, %c0_23] : memref<16x16xf32, #tpu.memory_space<vmem>>, vector<16x16xf32>
    %32 = arith.truncf %31 : vector<16x16xf32> to vector<16x16xbf16>
    %c0_24 = arith.constant 0 : index
    %c0_25 = arith.constant 0 : index
    %33 = vector.load %arg9[%c0_24, %c0_25] : memref<16x32xbf16, #tpu.memory_space<vmem>>, vector<16x32xbf16>
    %cst_26 = arith.constant dense<0.000000e+00> : vector<16x32xf32>
    %34 = tpu.matmul %32, %33, %cst_26 {dimension_numbers = #tpu.dot_dimension_numbers<[1], [0], [0], [1], [0, 0, 1, 1], [], []>} : vector<16x16xbf16>, vector<16x32xbf16>, vector<16x32xf32> -> vector<16x32xf32>
    %c0_27 = arith.constant 0 : index
    %c0_28 = arith.constant 0 : index
    %35 = vector.load %arg10[%c0_27, %c0_28] : memref<1x32xf32, #tpu.memory_space<vmem>>, vector<1x32xf32>
    %36 = vector.broadcast %35 : vector<1x32xf32> to vector<16x32xf32>
    %37 = arith.addf %34, %36 : vector<16x32xf32>
    %c0_29 = arith.constant 0 : index
    %c0_30 = arith.constant 0 : index
    %38 = vector.load %arg12[%c0_29, %c0_30] : memref<16x32xf32, #tpu.memory_space<vmem>>, vector<16x32xf32>
    %39 = arith.addf %37, %38 : vector<16x32xf32>
    %c0_31 = arith.constant 0 : index
    %c0_32 = arith.constant 0 : index
    %40 = vector.load %arg14[%c0_31, %c0_32] : memref<16x32xf32, #tpu.memory_space<vmem>>, vector<16x32xf32>
    tpu.vector_store %arg14[%c0_31, %c0_32], %39 {strides = array<i32>} : memref<16x32xf32, #tpu.memory_space<vmem>>, vector<16x32xf32>,
    return
  }
}

module attributes {stable_mosaic.version = 11 : i64} {
  func.func @linear_kernel(%arg0: memref<16x32xf32, #tpu.memory_space<vmem>>, %arg1: memref<32x16xbf16, #tpu.memory_space<vmem>>, %arg2: memref<1x16xf32, #tpu.memory_space<vmem>>, %arg3: memref<16x16xf32, #tpu.memory_space<vmem>>) attributes {dimension_semantics = [], scalar_prefetch = 0 : i64, scratch_operands = 0 : i64, tpu.core_type = #tpu.core_type<tc>} {
    %c0 = arith.constant 0 : index
    %c0_0 = arith.constant 0 : index
    %0 = vector.load %arg0[%c0, %c0_0] : memref<16x32xf32, #tpu.memory_space<vmem>>, vector<16x32xf32>
    %1 = arith.truncf %0 : vector<16x32xf32> to vector<16x32xbf16>
    %c0_1 = arith.constant 0 : index
    %c0_2 = arith.constant 0 : index
    %2 = vector.load %arg1[%c0_1, %c0_2] : memref<32x16xbf16, #tpu.memory_space<vmem>>, vector<32x16xbf16>
    %cst = arith.constant dense<0.000000e+00> : vector<16x16xf32>
    %3 = tpu.matmul %1, %2, %cst {dimension_numbers = #tpu.dot_dimension_numbers<[1], [0], [0], [1], [0, 0, 1, 1], [], []>} : vector<16x32xbf16>, vector<32x16xbf16>, vector<16x16xf32> -> vector<16x16xf32>
    %c0_3 = arith.constant 0 : index
    %c0_4 = arith.constant 0 : index
    %4 = vector.load %arg2[%c0_3, %c0_4] : memref<1x16xf32, #tpu.memory_space<vmem>>, vector<1x16xf32>
    %5 = vector.broadcast %4 : vector<1x16xf32> to vector<16x16xf32>
    %6 = arith.addf %3, %5 : vector<16x16xf32>
    %c0_5 = arith.constant 0 : index
    %c0_6 = arith.constant 0 : index
    %7 = vector.load %arg3[%c0_5, %c0_6] : memref<16x16xf32, #tpu.memory_space<vmem>>, vector<16x16xf32>
    tpu.vector_store %arg3[%c0_5, %c0_6], %6 {strides = array<i32>} : memref<16x16xf32, #tpu.memory_space<vmem>>, vector<16x16xf32>,
    return
  }
}

module attributes {stable_mosaic.version = 11 : i64} {
  func.func @encoder_layer_kernel(%arg0: i32, %arg1: memref<1x9x32xf32, #tpu.memory_space<vmem>>, %arg2: memref<1x1x9xf32, #tpu.memory_space<vmem>>, %arg3: memref<32x96xbf16, #tpu.memory_space<vmem>>, %arg4: memref<1x96xf32, #tpu.memory_space<vmem>>, %arg5: memref<4x8x32xbf16, #tpu.memory_space<vmem>>, %arg6: memref<1x32xf32, #tpu.memory_space<vmem>>, %arg7: memref<1x32xf32, #tpu.memory_space<vmem>>, %arg8: memref<1x32xf32, #tpu.memory_space<vmem>>, %arg9: memref<32x64xbf16, #tpu.memory_space<vmem>>, %arg10: memref<1x64xf32, #tpu.memory_space<vmem>>, %arg11: memref<64x32xbf16, #tpu.memory_space<vmem>>, %arg12: memref<1x32xf32, #tpu.memory_space<vmem>>, %arg13: memref<1x32xf32, #tpu.memory_space<vmem>>, %arg14: memref<1x32xf32, #tpu.memory_space<vmem>>, %arg15: memref<1x9x32xf32, #tpu.memory_space<vmem>>) attributes {dimension_semantics = [#tpu.dimension_semantics<parallel>], iteration_bounds = array<i64: 2>, scalar_prefetch = 0 : i64, scratch_operands = 0 : i64, tpu.core_type = #tpu.core_type<tc>, window_params = [{transform_indices = @transform_0, window_bounds = array<i64: 1, 9, 32>}, {transform_indices = @transform_1, window_bounds = array<i64: 1, 1, 9>}, {pipeline_mode = #tpu.pipeline_mode<synchronous>, transform_indices = @transform_2, window_bounds = array<i64: 32, 96>}, {pipeline_mode = #tpu.pipeline_mode<synchronous>, transform_indices = @transform_3, window_bounds = array<i64: 1, 96>}, {pipeline_mode = #tpu.pipeline_mode<synchronous>, transform_indices = @transform_4, window_bounds = array<i64: 4, 8, 32>}, {pipeline_mode = #tpu.pipeline_mode<synchronous>, transform_indices = @transform_5, window_bounds = array<i64: 1, 32>}, {pipeline_mode = #tpu.pipeline_mode<synchronous>, transform_indices = @transform_6, window_bounds = array<i64: 1, 32>}, {pipeline_mode = #tpu.pipeline_mode<synchronous>, transform_indices = @transform_7, window_bounds = array<i64: 1, 32>}, {pipeline_mode = #tpu.pipeline_mode<synchronous>, transform_indices = @transform_8, window_bounds = array<i64: 32, 64>}, {pipeline_mode = #tpu.pipeline_mode<synchronous>, transform_indices = @transform_9, window_bounds = array<i64: 1, 64>}, {pipeline_mode = #tpu.pipeline_mode<synchronous>, transform_indices = @transform_10, window_bounds = array<i64: 64, 32>}, {pipeline_mode = #tpu.pipeline_mode<synchronous>, transform_indices = @transform_11, window_bounds = array<i64: 1, 32>}, {pipeline_mode = #tpu.pipeline_mode<synchronous>, transform_indices = @transform_12, window_bounds = array<i64: 1, 32>}, {pipeline_mode = #tpu.pipeline_mode<synchronous>, transform_indices = @transform_13, window_bounds = array<i64: 1, 32>}, {transform_indices = @transform_14, window_bounds = array<i64: 1, 9, 32>}]} {
    %c0 = arith.constant 0 : index
    %c0_0 = arith.constant 0 : index
    %c0_1 = arith.constant 0 : index
    %0 = vector.load %arg1[%c0, %c0_0, %c0_1] : memref<1x9x32xf32, #tpu.memory_space<vmem>>, vector<1x9x32xf32>
    %1 = vector.shape_cast %0 : vector<1x9x32xf32> to vector<9x32xf32>
    %c0_2 = arith.constant 0 : index
    %c0_3 = arith.constant 0 : index
    %c0_4 = arith.constant 0 : index
    %2 = vector.load %arg2[%c0_2, %c0_3, %c0_4] : memref<1x1x9xf32, #tpu.memory_space<vmem>>, vector<1x1x9xf32>
    %3 = vector.shape_cast %2 : vector<1x1x9xf32> to vector<1x9xf32>
    %4 = arith.truncf %1 : vector<9x32xf32> to vector<9x32xbf16>
    %c0_5 = arith.constant 0 : index
    %c0_6 = arith.constant 0 : index
    %5 = vector.load %arg3[%c0_5, %c0_6] : memref<32x96xbf16, #tpu.memory_space<vmem>>, vector<32x96xbf16>
    %cst = arith.constant dense<0.000000e+00> : vector<9x96xf32>
    %6 = tpu.matmul %4, %5, %cst {dimension_numbers = #tpu.dot_dimension_numbers<[1], [0], [0], [1], [0, 0, 1, 1], [], []>} : vector<9x32xbf16>, vector<32x96xbf16>, vector<9x96xf32> -> vector<9x96xf32>
    %c0_7 = arith.constant 0 : index
    %c0_8 = arith.constant 0 : index
    %7 = vector.load %arg4[%c0_7, %c0_8] : memref<1x96xf32, #tpu.memory_space<vmem>>, vector<1x96xf32>
    %8 = vector.broadcast %7 : vector<1x96xf32> to vector<9x96xf32>
    %9 = arith.addf %6, %8 : vector<9x96xf32>
    %10 = vector.extract_strided_slice %9 {offsets = [0, 0], sizes = [9, 32], strides = [1, 1]} : vector<9x96xf32> to vector<9x32xf32>
    %11 = vector.extract_strided_slice %10 {offsets = [0, 0], sizes = [9, 8], strides = [1, 1]} : vector<9x32xf32> to vector<9x8xf32>
    %12 = vector.extract_strided_slice %10 {offsets = [0, 8], sizes = [9, 8], strides = [1, 1]} : vector<9x32xf32> to vector<9x8xf32>
    %13 = vector.extract_strided_slice %10 {offsets = [0, 16], sizes = [9, 8], strides = [1, 1]} : vector<9x32xf32> to vector<9x8xf32>
    %14 = vector.extract_strided_slice %10 {offsets = [0, 24], sizes = [9, 8], strides = [1, 1]} : vector<9x32xf32> to vector<9x8xf32>
    %15 = vector.shape_cast %11 : vector<9x8xf32> to vector<1x9x8xf32>
    %16 = vector.shape_cast %12 : vector<9x8xf32> to vector<1x9x8xf32>
    %17 = vector.shape_cast %13 : vector<9x8xf32> to vector<1x9x8xf32>
    %18 = vector.shape_cast %14 : vector<9x8xf32> to vector<1x9x8xf32>
    %19 = tpu.concatenate %15, %16, %17, %18 in 0 : vector<1x9x8xf32>, vector<1x9x8xf32>, vector<1x9x8xf32>, vector<1x9x8xf32> -> vector<4x9x8xf32>
    %20 = vector.extract_strided_slice %9 {offsets = [0, 32], sizes = [9, 32], strides = [1, 1]} : vector<9x96xf32> to vector<9x32xf32>
    %21 = vector.extract_strided_slice %20 {offsets = [0, 0], sizes = [9, 8], strides = [1, 1]} : vector<9x32xf32> to vector<9x8xf32>
    %22 = vector.extract_strided_slice %20 {offsets = [0, 8], sizes = [9, 8], strides = [1, 1]} : vector<9x32xf32> to vector<9x8xf32>
    %23 = vector.extract_strided_slice %20 {offsets = [0, 16], sizes = [9, 8], strides = [1, 1]} : vector<9x32xf32> to vector<9x8xf32>
    %24 = vector.extract_strided_slice %20 {offsets = [0, 24], sizes = [9, 8], strides = [1, 1]} : vector<9x32xf32> to vector<9x8xf32>
    %25 = vector.shape_cast %21 : vector<9x8xf32> to vector<1x9x8xf32>
    %26 = vector.shape_cast %22 : vector<9x8xf32> to vector<1x9x8xf32>
    %27 = vector.shape_cast %23 : vector<9x8xf32> to vector<1x9x8xf32>
    %28 = vector.shape_cast %24 : vector<9x8xf32> to vector<1x9x8xf32>
    %29 = tpu.concatenate %25, %26, %27, %28 in 0 : vector<1x9x8xf32>, vector<1x9x8xf32>, vector<1x9x8xf32>, vector<1x9x8xf32> -> vector<4x9x8xf32>
    %30 = vector.extract_strided_slice %9 {offsets = [0, 64], sizes = [9, 32], strides = [1, 1]} : vector<9x96xf32> to vector<9x32xf32>
    %31 = vector.extract_strided_slice %30 {offsets = [0, 0], sizes = [9, 8], strides = [1, 1]} : vector<9x32xf32> to vector<9x8xf32>
    %32 = vector.extract_strided_slice %30 {offsets = [0, 8], sizes = [9, 8], strides = [1, 1]} : vector<9x32xf32> to vector<9x8xf32>
    %33 = vector.extract_strided_slice %30 {offsets = [0, 16], sizes = [9, 8], strides = [1, 1]} : vector<9x32xf32> to vector<9x8xf32>
    %34 = vector.extract_strided_slice %30 {offsets = [0, 24], sizes = [9, 8], strides = [1, 1]} : vector<9x32xf32> to vector<9x8xf32>
    %35 = vector.shape_cast %31 : vector<9x8xf32> to vector<1x9x8xf32>
    %36 = vector.shape_cast %32 : vector<9x8xf32> to vector<1x9x8xf32>
    %37 = vector.shape_cast %33 : vector<9x8xf32> to vector<1x9x8xf32>
    %38 = vector.shape_cast %34 : vector<9x8xf32> to vector<1x9x8xf32>
    %39 = tpu.concatenate %35, %36, %37, %38 in 0 : vector<1x9x8xf32>, vector<1x9x8xf32>, vector<1x9x8xf32>, vector<1x9x8xf32> -> vector<4x9x8xf32>
    "tpu.trace_start"() <{level = 10 : i32, message = "hqd,hkd->hqk"}> : () -> ()
    %cst_9 = arith.constant dense<0.000000e+00> : vector<4x9x9xf32>
    %40 = tpu.matmul %19, %29, %cst_9 {dimension_numbers = #tpu.dot_dimension_numbers<[2], [2], [1], [1], [0, 0, 0, 1, 1, 1], [0], [0]>} : vector<4x9x8xf32>, vector<4x9x8xf32>, vector<4x9x9xf32> -> vector<4x9x9xf32>
    "tpu.trace_stop"() : () -> ()
    %cst_10 = arith.constant 0.353553385 : f32
    %41 = vector.broadcast %cst_10 : f32 to vector<4x9x9xf32>
    %42 = arith.mulf %40, %41 : vector<4x9x9xf32>
    %43 = vector.shape_cast %3 : vector<1x9xf32> to vector<1x1x9xf32>
    %44 = vector.broadcast %43 : vector<1x1x9xf32> to vector<4x9x9xf32>
    %45 = arith.addf %42, %44 : vector<4x9x9xf32>
    %cst_11 = arith.constant dense<0xFF800000> : vector<4x9xf32>
    %46 = vector.multi_reduction <maximumf>, %45, %cst_11 [2] : vector<4x9x9xf32> to vector<4x9xf32>
    %47 = vector.shape_cast %46 : vector<4x9xf32> to vector<4x9x1xf32>
    %48 = vector.broadcast %47 : vector<4x9x1xf32> to vector<4x9x9xf32>
    %49 = arith.subf %45, %48 : vector<4x9x9xf32>
    %50 = math.exp %49 : vector<4x9x9xf32>
    %cst_12 = arith.constant dense<0.000000e+00> : vector<4x9xf32>
    %51 = vector.multi_reduction <add>, %50, %cst_12 [2] : vector<4x9x9xf32> to vector<4x9xf32>
    %52 = vector.shape_cast %51 : vector<4x9xf32> to vector<4x9x1xf32>
    %53 = tpu.reciprocal %52 {approx = true} : vector<4x9x1xf32> -> vector<4x9x1xf32>
    %54 = vector.broadcast %53 : vector<4x9x1xf32> to vector<4x9x9xf32>
    %55 = arith.mulf %50, %54 : vector<4x9x9xf32>
    "tpu.trace_start"() <{level = 10 : i32, message = "hqk,hkd->hqd"}> : () -> ()
    %cst_13 = arith.constant dense<0.000000e+00> : vector<4x9x8xf32>
    %56 = tpu.matmul %55, %39, %cst_13 {dimension_numbers = #tpu.dot_dimension_numbers<[2], [1], [1], [2], [0, 0, 0, 1, 1, 2], [0], [0]>} : vector<4x9x9xf32>, vector<4x9x8xf32>, vector<4x9x8xf32> -> vector<4x9x8xf32>
    "tpu.trace_stop"() : () -> ()
    %57 = arith.truncf %56 : vector<4x9x8xf32> to vector<4x9x8xbf16>
    %c0_14 = arith.constant 0 : index
    %c0_15 = arith.constant 0 : index
    %c0_16 = arith.constant 0 : index
    %58 = vector.load %arg5[%c0_14, %c0_15, %c0_16] : memref<4x8x32xbf16, #tpu.memory_space<vmem>>, vector<4x8x32xbf16>
    "tpu.trace_start"() <{level = 10 : i32, message = "hqd,hde->hqe"}> : () -> ()
    %cst_17 = arith.constant dense<0.000000e+00> : vector<4x9x32xf32>
    %59 = tpu.matmul %57, %58, %cst_17 {dimension_numbers = #tpu.dot_dimension_numbers<[2], [1], [1], [2], [0, 0, 0, 1, 1, 2], [0], [0]>} : vector<4x9x8xbf16>, vector<4x8x32xbf16>, vector<4x9x32xf32> -> vector<4x9x32xf32>
    "tpu.trace_stop"() : () -> ()
    %60 = vector.extract_strided_slice %59 {offsets = [0, 0, 0], sizes = [1, 9, 32], strides = [1, 1, 1]} : vector<4x9x32xf32> to vector<1x9x32xf32>
    %61 = vector.shape_cast %60 : vector<1x9x32xf32> to vector<9x32xf32>
    %62 = vector.extract_strided_slice %59 {offsets = [1, 0, 0], sizes = [1, 9, 32], strides = [1, 1, 1]} : vector<4x9x32xf32> to vector<1x9x32xf32>
    %63 = vector.shape_cast %62 : vector<1x9x32xf32> to vector<9x32xf32>
    %64 = arith.addf %61, %63 : vector<9x32xf32>
    %65 = vector.extract_strided_slice %59 {offsets = [2, 0, 0], sizes = [1, 9, 32], strides = [1, 1, 1]} : vector<4x9x32xf32> to vector<1x9x32xf32>
    %66 = vector.shape_cast %65 : vector<1x9x32xf32> to vector<9x32xf32>
    %67 = arith.addf %64, %66 : vector<9x32xf32>
    %68 = vector.extract_strided_slice %59 {offsets = [3, 0, 0], sizes = [1, 9, 32], strides = [1, 1, 1]} : vector<4x9x32xf32> to vector<1x9x32xf32>
    %69 = vector.shape_cast %68 : vector<1x9x32xf32> to vector<9x32xf32>
    %70 = arith.addf %67, %69 : vector<9x32xf32>
    %c0_18 = arith.constant 0 : index
    %c0_19 = arith.constant 0 : index
    %71 = vector.load %arg6[%c0_18, %c0_19] : memref<1x32xf32, #tpu.memory_space<vmem>>, vector<1x32xf32>
    %72 = vector.broadcast %71 : vector<1x32xf32> to vector<9x32xf32>
    %73 = arith.addf %70, %72 : vector<9x32xf32>
    %74 = arith.addf %1, %73 : vector<9x32xf32>
    %c0_20 = arith.constant 0 : index
    %c0_21 = arith.constant 0 : index
    %75 = vector.load %arg7[%c0_20, %c0_21] : memref<1x32xf32, #tpu.memory_space<vmem>>, vector<1x32xf32>
    %c0_22 = arith.constant 0 : index
    %c0_23 = arith.constant 0 : index
    %76 = vector.load %arg8[%c0_22, %c0_23] : memref<1x32xf32, #tpu.memory_space<vmem>>, vector<1x32xf32>
    %cst_24 = arith.constant dense<0.000000e+00> : vector<9xf32>
    %77 = vector.multi_reduction <add>, %74, %cst_24 [1] : vector<9x32xf32> to vector<9xf32>
    %78 = vector.shape_cast %77 : vector<9xf32> to vector<9x1xf32>
    %cst_25 = arith.constant 3.200000e+01 : f32
    %79 = vector.broadcast %cst_25 : f32 to vector<9x1xf32>
    %80 = arith.divf %78, %79 : vector<9x1xf32>
    %81 = arith.mulf %74, %74 : vector<9x32xf32>
    %cst_26 = arith.constant dense<0.000000e+00> : vector<9xf32>
    %82 = vector.multi_reduction <add>, %81, %cst_26 [1] : vector<9x32xf32> to vector<9xf32>
    %83 = vector.shape_cast %82 : vector<9xf32> to vector<9x1xf32>
    %cst_27 = arith.constant 3.200000e+01 : f32
    %84 = vector.broadcast %cst_27 : f32 to vector<9x1xf32>
    %85 = arith.divf %83, %84 : vector<9x1xf32>
    %86 = arith.mulf %80, %80 : vector<9x1xf32>
    %87 = arith.subf %85, %86 : vector<9x1xf32>
    %88 = vector.broadcast %80 : vector<9x1xf32> to vector<9x32xf32>
    %89 = arith.subf %74, %88 : vector<9x32xf32>
    %cst_28 = arith.constant 9.99999974E-6 : f32
    %90 = vector.broadcast %cst_28 : f32 to vector<9x1xf32>
    %91 = arith.addf %87, %90 : vector<9x1xf32>
    %92 = math.rsqrt %91 : vector<9x1xf32>
    %93 = vector.broadcast %92 : vector<9x1xf32> to vector<9x32xf32>
    %94 = arith.mulf %89, %93 : vector<9x32xf32>
    %95 = vector.broadcast %75 : vector<1x32xf32> to vector<9x32xf32>
    %96 = arith.mulf %94, %95 : vector<9x32xf32>
    %97 = vector.broadcast %76 : vector<1x32xf32> to vector<9x32xf32>
    %98 = arith.addf %96, %97 : vector<9x32xf32>
    %99 = arith.truncf %98 : vector<9x32xf32> to vector<9x32xbf16>
    %c0_29 = arith.constant 0 : index
    %c0_30 = arith.constant 0 : index
    %100 = vector.load %arg9[%c0_29, %c0_30] : memref<32x64xbf16, #tpu.memory_space<vmem>>, vector<32x64xbf16>
    %cst_31 = arith.constant dense<0.000000e+00> : vector<9x64xf32>
    %101 = tpu.matmul %99, %100, %cst_31 {dimension_numbers = #tpu.dot_dimension_numbers<[1], [0], [0], [1], [0, 0, 1, 1], [], []>} : vector<9x32xbf16>, vector<32x64xbf16>, vector<9x64xf32> -> vector<9x64xf32>
    %c0_32 = arith.constant 0 : index
    %c0_33 = arith.constant 0 : index
    %102 = vector.load %arg10[%c0_32, %c0_33] : memref<1x64xf32, #tpu.memory_space<vmem>>, vector<1x64xf32>
    %103 = vector.broadcast %102 : vector<1x64xf32> to vector<9x64xf32>
    %104 = arith.addf %101, %103 : vector<9x64xf32>
    %cst_34 = arith.constant 5.000000e-01 : f32
    %105 = vector.broadcast %cst_34 : f32 to vector<9x64xf32>
    %106 = arith.mulf %105, %104 : vector<9x64xf32>
    %cst_35 = arith.constant 0.707106769 : f32
    %107 = vector.broadcast %cst_35 : f32 to vector<9x64xf32>
    %108 = arith.mulf %104, %107 : vector<9x64xf32>
    %109 = math.erf %108 : vector<9x64xf32>
    %cst_36 = arith.constant 1.000000e+00 : f32
    %110 = vector.broadcast %cst_36 : f32 to vector<9x64xf32>
    %111 = arith.addf %110, %109 : vector<9x64xf32>
    %112 = arith.mulf %106, %111 : vector<9x64xf32>
    %113 = arith.truncf %112 : vector<9x64xf32> to vector<9x64xbf16>
    %c0_37 = arith.constant 0 : index
    %c0_38 = arith.constant 0 : index
    %114 = vector.load %arg11[%c0_37, %c0_38] : memref<64x32xbf16, #tpu.memory_space<vmem>>, vector<64x32xbf16>
    %cst_39 = arith.constant dense<0.000000e+00> : vector<9x32xf32>
    %115 = tpu.matmul %113, %114, %cst_39 {dimension_numbers = #tpu.dot_dimension_numbers<[1], [0], [0], [1], [0, 0, 1, 1], [], []>} : vector<9x64xbf16>, vector<64x32xbf16>, vector<9x32xf32> -> vector<9x32xf32>
    %c0_40 = arith.constant 0 : index
    %c0_41 = arith.constant 0 : index
    %116 = vector.load %arg12[%c0_40, %c0_41] : memref<1x32xf32, #tpu.memory_space<vmem>>, vector<1x32xf32>
    %117 = vector.broadcast %116 : vector<1x32xf32> to vector<9x32xf32>
    %118 = arith.addf %115, %117 : vector<9x32xf32>
    %119 = arith.addf %98, %118 : vector<9x32xf32>
    %c0_42 = arith.constant 0 : index
    %c0_43 = arith.constant 0 : index
    %120 = vector.load %arg13[%c0_42, %c0_43] : memref<1x32xf32, #tpu.memory_space<vmem>>, vector<1x32xf32>
    %c0_44 = arith.constant 0 : index
    %c0_45 = arith.constant 0 : index
    %121 = vector.load %arg14[%c0_44, %c0_45] : memref<1x32xf32, #tpu.memory_space<vmem>>, vector<1x32xf32>
    %cst_46 = arith.constant dense<0.000000e+00> : vector<9xf32>
    %122 = vector.multi_reduction <add>, %119, %cst_46 [1] : vector<9x32xf32> to vector<9xf32>
    %123 = vector.shape_cast %122 : vector<9xf32> to vector<9x1xf32>
    %cst_47 = arith.constant 3.200000e+01 : f32
    %124 = vector.broadcast %cst_47 : f32 to vector<9x1xf32>
    %125 = arith.divf %123, %124 : vector<9x1xf32>
    %126 = arith.mulf %119, %119 : vector<9x32xf32>
    %cst_48 = arith.constant dense<0.000000e+00> : vector<9xf32>
    %127 = vector.multi_reduction <add>, %126, %cst_48 [1] : vector<9x32xf32> to vector<9xf32>
    %128 = vector.shape_cast %127 : vector<9xf32> to vector<9x1xf32>
    %cst_49 = arith.constant 3.200000e+01 : f32
    %129 = vector.broadcast %cst_49 : f32 to vector<9x1xf32>
    %130 = arith.divf %128, %129 : vector<9x1xf32>
    %131 = arith.mulf %125, %125 : vector<9x1xf32>
    %132 = arith.subf %130, %131 : vector<9x1xf32>
    %133 = vector.broadcast %125 : vector<9x1xf32> to vector<9x32xf32>
    %134 = arith.subf %119, %133 : vector<9x32xf32>
    %cst_50 = arith.constant 9.99999974E-6 : f32
    %135 = vector.broadcast %cst_50 : f32 to vector<9x1xf32>
    %136 = arith.addf %132, %135 : vector<9x1xf32>
    %137 = math.rsqrt %136 : vector<9x1xf32>
    %138 = vector.broadcast %137 : vector<9x1xf32> to vector<9x32xf32>
    %139 = arith.mulf %134, %138 : vector<9x32xf32>
    %140 = vector.broadcast %120 : vector<1x32xf32> to vector<9x32xf32>
    %141 = arith.mulf %139, %140 : vector<9x32xf32>
    %142 = vector.broadcast %121 : vector<1x32xf32> to vector<9x32xf32>
    %143 = arith.addf %141, %142 : vector<9x32xf32>
    %c0_51 = arith.constant 0 : index
    %c0_52 = arith.constant 0 : index
    %c0_53 = arith.constant 0 : index
    %144 = vector.load %arg15[%c0_51, %c0_52, %c0_53] : memref<1x9x32xf32, #tpu.memory_space<vmem>>, vector<1x9x32xf32>
    %145 = vector.shape_cast %144 : vector<1x9x32xf32> to vector<9x32xf32>
    %146 = vector.shape_cast %143 : vector<9x32xf32> to vector<1x9x32xf32>
    tpu.vector_store %arg15[%c0_51, %c0_52, %c0_53], %146 {strides = array<i32>} : memref<1x9x32xf32, #tpu.memory_space<vmem>>, vector<1x9x32xf32>,
    return
  }
  func.func @transform_0(%arg0: i32) -> (i32, i32, i32) {
    %c0_i32 = arith.constant 0 : i32
    %c0_i32_0 = arith.constant 0 : i32
    %c0_i32_1 = arith.constant 0 : i32
    return %arg0, %c0_i32, %c0_i32_0 : i32, i32, i32
  }
  func.func @transform_1(%arg0: i32) -> (i32, i32, i32) {
    %c0_i32 = arith.constant 0 : i32
    %c0_i32_0 = arith.constant 0 : i32
    %c0_i32_1 = arith.constant 0 : i32
    return %arg0, %c0_i32, %c0_i32_0 : i32, i32, i32
  }
  func.func @transform_2(%arg0: i32) -> (i32, i32) {
    %c0_i32 = arith.constant 0 : i32
    %c0_i32_0 = arith.constant 0 : i32
    %c0_i32_1 = arith.constant 0 : i32
    return %c0_i32, %c0_i32_0 : i32, i32
  }
  func.func @transform_3(%arg0: i32) -> (i32, i32) {
    %c0_i32 = arith.constant 0 : i32
    %c0_i32_0 = arith.constant 0 : i32
    %c0_i32_1 = arith.constant 0 : i32
    return %c0_i32, %c0_i32_0 : i32, i32
  }
  func.func @transform_4(%arg0: i32) -> (i32, i32, i32) {
    %c0_i32 = arith.constant 0 : i32
    %c0_i32_0 = arith.constant 0 : i32
    %c0_i32_1 = arith.constant 0 : i32
    %c0_i32_2 = arith.constant 0 : i32
    return %c0_i32, %c0_i32_0, %c0_i32_1 : i32, i32, i32
  }
  func.func @transform_5(%arg0: i32) -> (i32, i32) {
    %c0_i32 = arith.constant 0 : i32
    %c0_i32_0 = arith.constant 0 : i32
    %c0_i32_1 = arith.constant 0 : i32
    return %c0_i32, %c0_i32_0 : i32, i32
  }
  func.func @transform_6(%arg0: i32) -> (i32, i32) {
    %c0_i32 = arith.constant 0 : i32
    %c0_i32_0 = arith.constant 0 : i32
    %c0_i32_1 = arith.constant 0 : i32
    return %c0_i32, %c0_i32_0 : i32, i32
  }
  func.func @transform_7(%arg0: i32) -> (i32, i32) {
    %c0_i32 = arith.constant 0 : i32
    %c0_i32_0 = arith.constant 0 : i32
    %c0_i32_1 = arith.constant 0 : i32
    return %c0_i32, %c0_i32_0 : i32, i32
  }
  func.func @transform_8(%arg0: i32) -> (i32, i32) {
    %c0_i32 = arith.constant 0 : i32
    %c0_i32_0 = arith.constant 0 : i32
    %c0_i32_1 = arith.constant 0 : i32
    return %c0_i32, %c0_i32_0 : i32, i32
  }
  func.func @transform_9(%arg0: i32) -> (i32, i32) {
    %c0_i32 = arith.constant 0 : i32
    %c0_i32_0 = arith.constant 0 : i32
    %c0_i32_1 = arith.constant 0 : i32
    return %c0_i32, %c0_i32_0 : i32, i32
  }
  func.func @transform_10(%arg0: i32) -> (i32, i32) {
    %c0_i32 = arith.constant 0 : i32
    %c0_i32_0 = arith.constant 0 : i32
    %c0_i32_1 = arith.constant 0 : i32
    return %c0_i32, %c0_i32_0 : i32, i32
  }
  func.func @transform_11(%arg0: i32) -> (i32, i32) {
    %c0_i32 = arith.constant 0 : i32
    %c0_i32_0 = arith.constant 0 : i32
    %c0_i32_1 = arith.constant 0 : i32
    return %c0_i32, %c0_i32_0 : i32, i32
  }
  func.func @transform_12(%arg0: i32) -> (i32, i32) {
    %c0_i32 = arith.constant 0 : i32
    %c0_i32_0 = arith.constant 0 : i32
    %c0_i32_1 = arith.constant 0 : i32
    return %c0_i32, %c0_i32_0 : i32, i32
  }
  func.func @transform_13(%arg0: i32) -> (i32, i32) {
    %c0_i32 = arith.constant 0 : i32
    %c0_i32_0 = arith.constant 0 : i32
    %c0_i32_1 = arith.constant 0 : i32
    return %c0_i32, %c0_i32_0 : i32, i32
  }
  func.func @transform_14(%arg0: i32) -> (i32, i32, i32) {
    %c0_i32 = arith.constant 0 : i32
    %c0_i32_0 = arith.constant 0 : i32
    %c0_i32_1 = arith.constant 0 : i32
    return %arg0, %c0_i32, %c0_i32_0 : i32, i32, i32
  }
}

</mosaic_0001>

<llo_original>
// kernel: _lambda_.7
$region0: #{_lambda_.7}
  #allocation0 [shape = 'u32[]', space=smem, size = 0x4, offset = 0x4, fixed_abs, tag = 'smem constant byte address 0x4 - core index']
  #allocation1 [shape = 'u32[144,128]{1,0:T(1,128)}', space=vmem, size = 0x12000, scoped, tag = 'internal scratch']
  %s0 = inlined_call_operand.vmem [shape: f32[16,32], index: 0, kind: input, shape index: {}]
  %s1 = inlined_call_operand.vmem [shape: bf16[32,16], index: 1, kind: input, shape index: {}]
  %s2 = inlined_call_operand.vmem [shape: f32[1,16], index: 2, kind: input, shape index: {}]
  %s3 = inlined_call_operand.vmem [shape: f32[16,16], index: 3, kind: output, shape index: {}]
  %s4 = sld [smem:[#allocation0]]
  $region22: #{_lambda_.7} parent=0
    _
  %s6 = ssub.s32 1, %s4
  %s7 = scalar_select 0, %s6, %s4
  // Predicated region
  $region2: #{_lambda_.7} parent=0 // pred_check
    _
  $region3: #{_lambda_.7} parent=0 // pred_check_branch
    %9 = sbr.rel (0) target = $region5
  $region4: #{_lambda_.7} parent=0 // pred_region
    _
  $region5: #{_lambda_.7} parent=0 // pred_fallthru
    _
  // Predicated region
  $region6: #{_lambda_.7} parent=0 // pred_check
    _
  $region7: #{_lambda_.7} parent=0 // pred_check_branch
    %11 = sbr.rel (0) target = $region9
  $region8: #{_lambda_.7} parent=0 // pred_region
    _
  $region9: #{_lambda_.7} parent=0 // pred_fallthru
    _
  // Predicated region
  $region10: #{_lambda_.7} parent=0 // pred_check
    _
  $region11: #{_lambda_.7} parent=0 // pred_check_branch
    %13 = sbr.rel (0) target = $region13
  $region12: #{_lambda_.7} parent=0 // pred_region
    _
  $region13: #{_lambda_.7} parent=0 // pred_fallthru
    _
  %v15 = vld [vmem:[%s0] sm:$0xff]
  %v16 = vld [vmem:[%s0 + $0x8] sm:$0xff]
  %v17 = vpack.c.bf16 %v16, %v15
  %v18 = vld [vmem:[%s1] sm:$0xf]
  %v19 = vld [vmem:[%s1 + $0x4] sm:$0xf]
  %v20 = vld [vmem:[%s1 + $0x8] sm:$0xf]
  %v21 = vld [vmem:[%s1 + $0xc] sm:$0xf]
  %v22 = vld [vmem:[%s2] sm:$0x1]
  %v24 = vlaneseq
  %v25 = vshrl.u32 %v24, 7
  %v26 = vsub.s32 0, %v25
  %v27 = vrot.slane %v22, %v26
  %v33 = vunpack.c.l.b16 %v18
  %v34 = vunpack.c.l.b16 %v19
  %v35 = vunpack.c.l.b16 %v20
  %v36 = vunpack.c.l.b16 %v21
  %v37 = vpack.c.b16 %v34, %v33
  %v38 = vpack.c.b16 %v36, %v35
  %vm41 = vcmask 261120
  %v43 = vsel %vm41, %v17, 0
  %45 = vmatprep.subr.bf16.mxu0 0
  %46 = vmatpush1.bf16.msra.mxu0 0
  %47 = vmatprep.subr.bf16.mxu0 0
  %48 = vmatpush1.bf16.msra.mxu0 0
  %49 = vmatprep.subr.bf16.mxu0 0
  %50 = vmatpush1.bf16.msra.mxu0 0
  %51 = vmatprep.subr.bf16.mxu0 0
  %52 = vmatpush1.bf16.msra.mxu0 0
  %53 = vmatprep.subr.bf16.mxu0 0
  %54 = vmatpush1.bf16.msra.mxu0 0
  %55 = vmatprep.subr.bf16.mxu0 0
  %56 = vmatpush1.bf16.msra.mxu0 0
  %57 = vmatprep.subr.bf16.mxu0 0
  %58 = vmatpush1.bf16.msra.mxu0 %v38
  %59 = vmatprep.subr.bf16.mxu0 0
  %60 = vmatpush1.bf16.msra.mxu0 %v37
  %61 = vmatprep.subr.bf16.mxu0 0
  %62 = vmatpush2.bf16.msra.mxu0 0
  %63 = vmatprep.subr.bf16.mxu0 0
  %64 = vmatpush2.bf16.msra.mxu0 0
  %65 = vmatprep.subr.bf16.mxu0 0
  %66 = vmatpush2.bf16.msra.mxu0 0
  %67 = vmatprep.subr.bf16.mxu0 0
  %68 = vmatpush2.bf16.msra.mxu0 0
  %69 = vmatprep.subr.bf16.mxu0 0
  %70 = vmatpush2.bf16.msra.mxu0 0
  %71 = vmatprep.subr.bf16.mxu0 0
  %72 = vmatpush2.bf16.msra.mxu0 0
  %73 = vmatprep.subr.bf16.mxu0 0
  %74 = vmatpush2.bf16.msra.mxu0 0
  %75 = vmatprep.subr.bf16.mxu0 0
  %76 = vmatpush2.bf16.msra.mxu0 0
  %77 = vmatprep.mubr.bf16.mxu0 0
  %78 = vmatmul.mubr.bf16.gmra.mxu0 %v43
  %v79 = vpop.f32.mrf.mxu0
  %v80 = vadd.f32 %v27, %v79
  %v81 = vpop.f32.mrf.mxu0
  %v82 = vpop.f32.mrf.mxu0
  %v83 = vadd.f32 %v27, %v82
  %v84 = vpop.f32.mrf.mxu0
  %85 = vdwg.mxu0
  %vm86 = vcmask 130048
  %87 = vst.msk [vmem:[%s3] sm:$0xff] %vm86, %v80
  %88 = vst.msk [vmem:[%s3 + $0x8] sm:$0xff] %vm86, %v83
  // Predicated region
  $region14: #{_lambda_.7} parent=0 // pred_check
    _
  $region15: #{_lambda_.7} parent=0 // pred_check_branch
    %90 = sbr.rel (0) target = $region17
  $region16: #{_lambda_.7} parent=0 // pred_region
    _
  $region17: #{_lambda_.7} parent=0 // pred_fallthru
    _
  // Predicated region
  $region18: #{_lambda_.7} parent=0 // pred_check
    _
  $region19: #{_lambda_.7} parent=0 // pred_check_branch
    %92 = sbr.rel (0) target = $region21
  $region20: #{_lambda_.7} parent=0 // pred_region
    _
  $region21: #{_lambda_.7} parent=0 // pred_fallthru
    _

// kernel: _lambda_.4
$region0: #{_lambda_.4}
  #allocation0 [shape = 'u32[]', space=smem, size = 0x4, offset = 0x4, fixed_abs, tag = 'smem constant byte address 0x4 - core index']
  #allocation1 [shape = 'u32[144,128]{1,0:T(1,128)}', space=vmem, size = 0x12000, scoped, tag = 'internal scratch']
  %s0 = inlined_call_operand.vmem [shape: f32[2,32], index: 0, kind: input, shape index: {}]
  %s1 = inlined_call_operand.vmem [shape: f32[2,16], index: 1, kind: input, shape index: {}]
  %s2 = inlined_call_operand.vmem [shape: f32[16,16], index: 2, kind: input, shape index: {}]
  %s3 = inlined_call_operand.vmem [shape: bf16[32,32], index: 3, kind: input, shape index: {}]
  %s4 = inlined_call_operand.vmem [shape: f32[1,32], index: 4, kind: input, shape index: {}]
  %s5 = inlined_call_operand.vmem [shape: bf16[32,32], index: 5, kind: input, shape index: {}]
  %s6 = inlined_call_operand.vmem [shape: f32[1,32], index: 6, kind: input, shape index: {}]
  %s7 = inlined_call_operand.vmem [shape: bf16[16,32], index: 7, kind: input, shape index: {}]
  %s8 = inlined_call_operand.vmem [shape: f32[1,32], index: 8, kind: input, shape index: {}]
  %s9 = inlined_call_operand.vmem [shape: bf16[16,32], index: 9, kind: input, shape index: {}]
  %s10 = inlined_call_operand.vmem [shape: f32[1,32], index: 10, kind: input, shape index: {}]
  %s11 = inlined_call_operand.vmem [shape: f32[1,32], index: 11, kind: input, shape index: {}]
  %s12 = inlined_call_operand.vmem [shape: f32[16,32], index: 12, kind: input, shape index: {}]
  %s13 = inlined_call_operand.vmem [shape: f32[2,32], index: 13, kind: output, shape index: {0}]
  %s14 = inlined_call_operand.vmem [shape: f32[16,32], index: 14, kind: output, shape index: {1}]
  %15 = xla_tuple %s13, %s14
  %s16 = sld [smem:[#allocation0]]
  $region70: #{_lambda_.4} parent=0
    _
  %s18 = ssub.s32 1, %s16
  %s19 = scalar_select 0, %s18, %s16
  // Predicated region
  $region2: #{_lambda_.4} parent=0 // pred_check
    _
  $region3: #{_lambda_.4} parent=0 // pred_check_branch
    %21 = sbr.rel (0) target = $region5
  $region4: #{_lambda_.4} parent=0 // pred_region
    _
  $region5: #{_lambda_.4} parent=0 // pred_fallthru
    _
  // Predicated region
  $region6: #{_lambda_.4} parent=0 // pred_check
    _
  $region7: #{_lambda_.4} parent=0 // pred_check_branch
    %23 = sbr.rel (0) target = $region9
  $region8: #{_lambda_.4} parent=0 // pred_region
    _
  $region9: #{_lambda_.4} parent=0 // pred_fallthru
    _
  // Predicated region
  $region10: #{_lambda_.4} parent=0 // pred_check
    _
  $region11: #{_lambda_.4} parent=0 // pred_check_branch
    %25 = sbr.rel (0) target = $region13
  $region12: #{_lambda_.4} parent=0 // pred_region
    _
  $region13: #{_lambda_.4} parent=0 // pred_fallthru
    _
  // Predicated region
  $region14: #{_lambda_.4} parent=0 // pred_check
    _
  $region15: #{_lambda_.4} parent=0 // pred_check_branch
    %27 = sbr.rel (0) target = $region17
  $region16: #{_lambda_.4} parent=0 // pred_region
    _
  $region17: #{_lambda_.4} parent=0 // pred_fallthru
    _
  // Predicated region
  $region18: #{_lambda_.4} parent=0 // pred_check
    _
  $region19: #{_lambda_.4} parent=0 // pred_check_branch
    %29 = sbr.rel (0) target = $region21
  $region20: #{_lambda_.4} parent=0 // pred_region
    _
  $region21: #{_lambda_.4} parent=0 // pred_fallthru
    _
  // Predicated region
  $region22: #{_lambda_.4} parent=0 // pred_check
    _
  $region23: #{_lambda_.4} parent=0 // pred_check_branch
    %31 = sbr.rel (0) target = $region25
  $region24: #{_lambda_.4} parent=0 // pred_region
    _
  $region25: #{_lambda_.4} parent=0 // pred_fallthru
    _
  // Predicated region
  $region26: #{_lambda_.4} parent=0 // pred_check
    _
  $region27: #{_lambda_.4} parent=0 // pred_check_branch
    %33 = sbr.rel (0) target = $region29
  $region28: #{_lambda_.4} parent=0 // pred_region
    _
  $region29: #{_lambda_.4} parent=0 // pred_fallthru
    _
  // Predicated region
  $region30: #{_lambda_.4} parent=0 // pred_check
    _
  $region31: #{_lambda_.4} parent=0 // pred_check_branch
    %35 = sbr.rel (0) target = $region33
  $region32: #{_lambda_.4} parent=0 // pred_region
    _
  $region33: #{_lambda_.4} parent=0 // pred_fallthru
    _
  // Predicated region
  $region34: #{_lambda_.4} parent=0 // pred_check
    _
  $region35: #{_lambda_.4} parent=0 // pred_check_branch
    %37 = sbr.rel (0) target = $region37
  $region36: #{_lambda_.4} parent=0 // pred_region
    _
  $region37: #{_lambda_.4} parent=0 // pred_fallthru
    _
  // Predicated region
  $region38: #{_lambda_.4} parent=0 // pred_check
    _
  $region39: #{_lambda_.4} parent=0 // pred_check_branch
    %39 = sbr.rel (0) target = $region41
  $region40: #{_lambda_.4} parent=0 // pred_region
    _
  $region41: #{_lambda_.4} parent=0 // pred_fallthru
    _
  // Predicated region
  $region42: #{_lambda_.4} parent=0 // pred_check
    _
  $region43: #{_lambda_.4} parent=0 // pred_check_branch
    %41 = sbr.rel (0) target = $region45
  $region44: #{_lambda_.4} parent=0 // pred_region
    _
  $region45: #{_lambda_.4} parent=0 // pred_fallthru
    _
  // Predicated region
  $region46: #{_lambda_.4} parent=0 // pred_check
    _
  $region47: #{_lambda_.4} parent=0 // pred_check_branch
    %43 = sbr.rel (0) target = $region49
  $region48: #{_lambda_.4} parent=0 // pred_region
    _
  $region49: #{_lambda_.4} parent=0 // pred_fallthru
    _
  // Predicated region
  $region50: #{_lambda_.4} parent=0 // pred_check
    _
  $region51: #{_lambda_.4} parent=0 // pred_check_branch
    %45 = sbr.rel (0) target = $region53
  $region52: #{_lambda_.4} parent=0 // pred_region
    _
  $region53: #{_lambda_.4} parent=0 // pred_fallthru
    _
  %v47 = vld [vmem:[%s0] sm:$0x3]
  %v48 = vpack.c.bf16 %v47, %v47
  %v49 = vld [vmem:[%s3] sm:$0xf]
  %v50 = vld [vmem:[%s3 + $0x4] sm:$0xf]
  %v51 = vld [vmem:[%s3 + $0x8] sm:$0xf]
  %v52 = vld [vmem:[%s3 + $0xc] sm:$0xf]
  %v53 = vld [vmem:[%s4] sm:$0x1]
  %v55 = vlaneseq
  %v56 = vshrl.u32 %v55, 7
  %v57 = vsub.s32 0, %v56
  %v58 = vrot.slane %v53, %v57
  %v64 = vunpack.c.l.b16 %v49
  %v65 = vunpack.c.l.b16 %v50
  %v66 = vunpack.c.l.b16 %v51
  %v67 = vunpack.c.l.b16 %v52
  %v68 = vpack.c.b16 %v65, %v64
  %v69 = vpack.c.b16 %v67, %v66
  %vm72 = vcmask 261120
  %v74 = vsel %vm72, %v48, 0
  %76 = vmatprep.subr.bf16.mxu0 0
  %77 = vmatpush1.bf16.msra.mxu0 0
  %78 = vmatprep.subr.bf16.mxu0 0
  %79 = vmatpush1.bf16.msra.mxu0 0
  %80 = vmatprep.subr.bf16.mxu0 0
  %81 = vmatpush1.bf16.msra.mxu0 0
  %82 = vmatprep.subr.bf16.mxu0 0
  %83 = vmatpush1.bf16.msra.mxu0 0
  %84 = vmatprep.subr.bf16.mxu0 0
  %85 = vmatpush1.bf16.msra.mxu0 0
  %86 = vmatprep.subr.bf16.mxu0 0
  %87 = vmatpush1.bf16.msra.mxu0 0
  %88 = vmatprep.subr.bf16.mxu0 0
  %89 = vmatpush1.bf16.msra.mxu0 %v69
  %90 = vmatprep.subr.bf16.mxu0 0
  %91 = vmatpush1.bf16.msra.mxu0 %v68
  %92 = vmatprep.subr.bf16.mxu0 0
  %93 = vmatpush2.bf16.msra.mxu0 0
  %94 = vmatprep.subr.bf16.mxu0 0
  %95 = vmatpush2.bf16.msra.mxu0 0
  %96 = vmatprep.subr.bf16.mxu0 0
  %97 = vmatpush2.bf16.msra.mxu0 0
  %98 = vmatprep.subr.bf16.mxu0 0
  %99 = vmatpush2.bf16.msra.mxu0 0
  %100 = vmatprep.subr.bf16.mxu0 0
  %101 = vmatpush2.bf16.msra.mxu0 0
  %102 = vmatprep.subr.bf16.mxu0 0
  %103 = vmatpush2.bf16.msra.mxu0 0
  %104 = vmatprep.subr.bf16.mxu0 0
  %105 = vmatpush2.bf16.msra.mxu0 0
  %106 = vmatprep.subr.bf16.mxu0 0
  %107 = vmatpush2.bf16.msra.mxu0 0
  %108 = vmatprep.mubr.bf16.mxu0 0
  %109 = vmatmul.mubr.bf16.gmra.mxu0 %v74
  %v110 = vpop.f32.mrf.mxu0
  %v111 = vadd.f32 %v58, %v110
  %v112 = vpop.f32.mrf.mxu0
  %v113 = vpop.f32.mrf.mxu0
  %v114 = vpop.f32.mrf.mxu0
  %115 = vdwg.mxu0
  %v116 = vxor.u32 %v111, 2147483648
  %v117 = vmul.f32 %v116, 1.442695
  %v118 = vpow.pop %v117
  %v119 = vadd.f32 %v118, 1.0
  %v120 = vrcp.pop %v119
  %v121 = vmul.f32 1.0, %v120
  %v122 = vmul.f32 %v111, %v121
  %v123 = vpack.c.bf16 %v122, %v122
  %v124 = vld [vmem:[%s5] sm:$0xf]
  %v125 = vld [vmem:[%s5 + $0x4] sm:$0xf]
  %v126 = vld [vmem:[%s5 + $0x8] sm:$0xf]
  %v127 = vld [vmem:[%s5 + $0xc] sm:$0xf]
  %v128 = vld [vmem:[%s6] sm:$0x1]
  %v130 = vlaneseq
  %v131 = vshrl.u32 %v130, 7
  %v132 = vsub.s32 0, %v131
  %v133 = vrot.slane %v128, %v132
  %v139 = vunpack.c.l.b16 %v124
  %v140 = vunpack.c.l.b16 %v125
  %v141 = vunpack.c.l.b16 %v126
  %v142 = vunpack.c.l.b16 %v127
  %v143 = vpack.c.b16 %v140, %v139
  %v144 = vpack.c.b16 %v142, %v141
  %v148 = vsel %vm72, %v123, 0
  %150 = vmatprep.subr.bf16.mxu0 0
  %151 = vmatpush1.bf16.msra.mxu0 0
  %152 = vmatprep.subr.bf16.mxu0 0
  %153 = vmatpush1.bf16.msra.mxu0 0
  %154 = vmatprep.subr.bf16.mxu0 0
  %155 = vmatpush1.bf16.msra.mxu0 0
  %156 = vmatprep.subr.bf16.mxu0 0
  %157 = vmatpush1.bf16.msra.mxu0 0
  %158 = vmatprep.subr.bf16.mxu0 0
  %159 = vmatpush1.bf16.msra.mxu0 0
  %160 = vmatprep.subr.bf16.mxu0 0
  %161 = vmatpush1.bf16.msra.mxu0 0
  %162 = vmatprep.subr.bf16.mxu0 0
  %163 = vmatpush1.bf16.msra.mxu0 %v144
  %164 = vmatprep.subr.bf16.mxu0 0
  %165 = vmatpush1.bf16.msra.mxu0 %v143
  %166 = vmatprep.subr.bf16.mxu0 0
  %167 = vmatpush2.bf16.msra.mxu0 0
  %168 = vmatprep.subr.bf16.mxu0 0
  %169 = vmatpush2.bf16.msra.mxu0 0
  %170 = vmatprep.subr.bf16.mxu0 0
  %171 = vmatpush2.bf16.msra.mxu0 0
  %172 = vmatprep.subr.bf16.mxu0 0
  %173 = vmatpush2.bf16.msra.mxu0 0
  %174 = vmatprep.subr.bf16.mxu0 0
  %175 = vmatpush2.bf16.msra.mxu0 0
  %176 = vmatprep.subr.bf16.mxu0 0
  %177 = vmatpush2.bf16.msra.mxu0 0
  %178 = vmatprep.subr.bf16.mxu0 0
  %179 = vmatpush2.bf16.msra.mxu0 0
  %180 = vmatprep.subr.bf16.mxu0 0
  %181 = vmatpush2.bf16.msra.mxu0 0
  %182 = vmatprep.mubr.bf16.mxu0 0
  %183 = vmatmul.mubr.bf16.gmra.mxu0 %v148
  %v184 = vpop.f32.mrf.mxu0
  %v185 = vadd.f32 %v133, %v184
  %v186 = vpop.f32.mrf.mxu0
  %v187 = vpop.f32.mrf.mxu0
  %v188 = vpop.f32.mrf.mxu0
  %189 = vdwg.mxu0
  %v190 = vld [vmem:[%s1] sm:$0x3]
  %v191 = vpack.c.bf16 %v190, %v190
  %v192 = vld [vmem:[%s7] sm:$0xf]
  %v193 = vld [vmem:[%s7 + $0x4] sm:$0xf]
  %v194 = vld [vmem:[%s8] sm:$0x1]
  %v196 = vlaneseq
  %v197 = vshrl.u32 %v196, 7
  %v198 = vsub.s32 0, %v197
  %v199 = vrot.slane %v194, %v198
  %v203 = vunpack.c.l.b16 %v192
  %v204 = vunpack.c.l.b16 %v193
  %v205 = vpack.c.b16 %v204, %v203
  %vm207 = vcmask 130048
  %v209 = vsel %vm207, %v191, 0
  %211 = vmatprep.subr.bf16.mxu0 0
  %212 = vmatpush1.bf16.msra.mxu0 0
  %213 = vmatprep.subr.bf16.mxu0 0
  %214 = vmatpush1.bf16.msra.mxu0 0
  %215 = vmatprep.subr.bf16.mxu0 0
  %216 = vmatpush1.bf16.msra.mxu0 0
  %217 = vmatprep.subr.bf16.mxu0 0
  %218 = vmatpush1.bf16.msra.mxu0 0
  %219 = vmatprep.subr.bf16.mxu0 0
  %220 = vmatpush1.bf16.msra.mxu0 0
  %221 = vmatprep.subr.bf16.mxu0 0
  %222 = vmatpush1.bf16.msra.mxu0 0
  %223 = vmatprep.subr.bf16.mxu0 0
  %224 = vmatpush1.bf16.msra.mxu0 0
  %225 = vmatprep.subr.bf16.mxu0 0
  %226 = vmatpush1.bf16.msra.mxu0 %v205
  %227 = vmatprep.subr.bf16.mxu0 0
  %228 = vmatpush2.bf16.msra.mxu0 0
  %229 = vmatprep.subr.bf16.mxu0 0
  %230 = vmatpush2.bf16.msra.mxu0 0
  %231 = vmatprep.subr.bf16.mxu0 0
  %232 = vmatpush2.bf16.msra.mxu0 0
  %233 = vmatprep.subr.bf16.mxu0 0
  %234 = vmatpush2.bf16.msra.mxu0 0
  %235 = vmatprep.subr.bf16.mxu0 0
  %236 = vmatpush2.bf16.msra.mxu0 0
  %237 = vmatprep.subr.bf16.mxu0 0
  %238 = vmatpush2.bf16.msra.mxu0 0
  %239 = vmatprep.subr.bf16.mxu0 0
  %240 = vmatpush2.bf16.msra.mxu0 0
  %241 = vmatprep.subr.bf16.mxu0 0
  %242 = vmatpush2.bf16.msra.mxu0 0
  %243 = vmatprep.mubr.bf16.mxu0 0
  %244 = vmatmul.mubr.bf16.gmra.mxu0 %v209
  %v245 = vpop.f32.mrf.mxu0
  %v246 = vadd.f32 %v199, %v245
  %v247 = vpop.f32.mrf.mxu0
  %v248 = vpop.f32.mrf.mxu0
  %v249 = vpop.f32.mrf.mxu0
  %250 = vdwg.mxu0
  %v251 = vadd.f32 %v185, %v246
  %v252 = vld [vmem:[%s11] sm:$0x1]
  %v254 = vlaneseq
  %v255 = vshrl.u32 %v254, 7
  %v256 = vsub.s32 0, %v255
  %v257 = vrot.slane %v252, %v256
  %v259 = vadd.f32 %v251, %v257
  %vm260 = vcmask 254976
  %261 = vst.msk [vmem:[%s13] sm:$0x3] %vm260, %v259
  %v262 = vld [vmem:[%s2] sm:$0xff]
  %v263 = vld [vmem:[%s2 + $0x8] sm:$0xff]
  %v264 = vpack.c.bf16 %v263, %v262
  %v265 = vld [vmem:[%s9] sm:$0xf]
  %v266 = vld [vmem:[%s9 + $0x4] sm:$0xf]
  %v267 = vld [vmem:[%s10] sm:$0x1]
  %v269 = vlaneseq
  %v270 = vshrl.u32 %v269, 7
  %v271 = vsub.s32 0, %v270
  %v272 = vrot.slane %v267, %v271
  %v276 = vunpack.c.l.b16 %v265
  %v277 = vunpack.c.l.b16 %v266
  %v278 = vpack.c.b16 %v277, %v276
  %v281 = vsel %vm207, %v264, 0
  %283 = vmatprep.subr.bf16.mxu0 0
  %284 = vmatpush1.bf16.msra.mxu0 0
  %285 = vmatprep.subr.bf16.mxu0 0
  %286 = vmatpush1.bf16.msra.mxu0 0
  %287 = vmatprep.subr.bf16.mxu0 0
  %288 = vmatpush1.bf16.msra.mxu0 0
  %289 = vmatprep.subr.bf16.mxu0 0
  %290 = vmatpush1.bf16.msra.mxu0 0
  %291 = vmatprep.subr.bf16.mxu0 0
  %292 = vmatpush1.bf16.msra.mxu0 0
  %293 = vmatprep.subr.bf16.mxu0 0
  %294 = vmatpush1.bf16.msra.mxu0 0
  %295 = vmatprep.subr.bf16.mxu0 0
  %296 = vmatpush1.bf16.msra.mxu0 0
  %297 = vmatprep.subr.bf16.mxu0 0
  %298 = vmatpush1.bf16.msra.mxu0 %v278
  %299 = vmatprep.subr.bf16.mxu0 0
  %300 = vmatpush2.bf16.msra.mxu0 0
  %301 = vmatprep.subr.bf16.mxu0 0
  %302 = vmatpush2.bf16.msra.mxu0 0
  %303 = vmatprep.subr.bf16.mxu0 0
  %304 = vmatpush2.bf16.msra.mxu0 0
  %305 = vmatprep.subr.bf16.mxu0 0
  %306 = vmatpush2.bf16.msra.mxu0 0
  %307 = vmatprep.subr.bf16.mxu0 0
  %308 = vmatpush2.bf16.msra.mxu0 0
  %309 = vmatprep.subr.bf16.mxu0 0
  %310 = vmatpush2.bf16.msra.mxu0 0
  %311 = vmatprep.subr.bf16.mxu0 0
  %312 = vmatpush2.bf16.msra.mxu0 0
  %313 = vmatprep.subr.bf16.mxu0 0
  %314 = vmatpush2.bf16.msra.mxu0 0
  %315 = vmatprep.mubr.bf16.mxu0 0
  %316 = vmatmul.mubr.bf16.gmra.mxu0 %v281
  %v317 = vpop.f32.mrf.mxu0
  %v318 = vadd.f32 %v272, %v317
  %v319 = vpop.f32.mrf.mxu0
  %v320 = vpop.f32.mrf.mxu0
  %v321 = vadd.f32 %v272, %v320
  %v322 = vpop.f32.mrf.mxu0
  %323 = vdwg.mxu0
  %v324 = vld [vmem:[%s12] sm:$0xff]
  %v325 = vld [vmem:[%s12 + $0x8] sm:$0xff]
  %v326 = vadd.f32 %v318, %v324
  %v327 = vadd.f32 %v321, %v325
  %328 = vst.msk [vmem:[%s14] sm:$0xff] %vm72, %v326
  %329 = vst.msk [vmem:[%s14 + $0x8] sm:$0xff] %vm72, %v327
  // Predicated region
  $region54: #{_lambda_.4} parent=0 // pred_check
    _
  $region55: #{_lambda_.4} parent=0 // pred_check_branch
    %331 = sbr.rel (0) target = $region57
  $region56: #{_lambda_.4} parent=0 // pred_region
    _
  $region57: #{_lambda_.4} parent=0 // pred_fallthru
    _
  // Predicated region
  $region58: #{_lambda_.4} parent=0 // pred_check
    _
  $region59: #{_lambda_.4} parent=0 // pred_check_branch
    %333 = sbr.rel (0) target = $region61
  $region60: #{_lambda_.4} parent=0 // pred_region
    _
  $region61: #{_lambda_.4} parent=0 // pred_fallthru
    _
  // Predicated region
  $region62: #{_lambda_.4} parent=0 // pred_check
    _
  $region63: #{_lambda_.4} parent=0 // pred_check_branch
    %335 = sbr.rel (0) target = $region65
  $region64: #{_lambda_.4} parent=0 // pred_region
    _
  $region65: #{_lambda_.4} parent=0 // pred_fallthru
    _
  // Predicated region
  $region66: #{_lambda_.4} parent=0 // pred_check
    _
  $region67: #{_lambda_.4} parent=0 // pred_check_branch
    %337 = sbr.rel (0) target = $region69
  $region68: #{_lambda_.4} parent=0 // pred_region
    _
  $region69: #{_lambda_.4} parent=0 // pred_fallthru
    _

// kernel: _lambda_.5
$region0: #{_lambda_.5}
  #allocation0 [shape = 'u32[]', space=smem, size = 0x4, offset = 0x4, fixed_abs, tag = 'smem constant byte address 0x4 - core index']
  #allocation1 [shape = 'u32[144,128]{1,0:T(1,128)}', space=vmem, size = 0x12000, scoped, tag = 'internal scratch']
  %s0 = inlined_call_operand.vmem [shape: f32[2,9,32], index: 0, kind: input, shape index: {}]
  %s1 = inlined_call_operand.vmem [shape: f32[2,1,9], index: 1, kind: input, shape index: {}]
  %s2 = inlined_call_operand.vmem [shape: bf16[32,96], index: 2, kind: input, shape index: {}]
  %s3 = inlined_call_operand.vmem [shape: f32[1,96], index: 3, kind: input, shape index: {}]
  %s4 = inlined_call_operand.vmem [shape: bf16[4,8,32], index: 4, kind: input, shape index: {}]
  %s5 = inlined_call_operand.vmem [shape: f32[1,32], index: 5, kind: input, shape index: {}]
  %s6 = inlined_call_operand.vmem [shape: f32[1,32], index: 6, kind: input, shape index: {}]
  %s7 = inlined_call_operand.vmem [shape: f32[1,32], index: 7, kind: input, shape index: {}]
  %s8 = inlined_call_operand.vmem [shape: bf16[32,64], index: 8, kind: input, shape index: {}]
  %s9 = inlined_call_operand.vmem [shape: f32[1,64], index: 9, kind: input, shape index: {}]
  %s10 = inlined_call_operand.vmem [shape: bf16[64,32], index: 10, kind: input, shape index: {}]
  %s11 = inlined_call_operand.vmem [shape: f32[1,32], index: 11, kind: input, shape index: {}]
  %s12 = inlined_call_operand.vmem [shape: f32[1,32], index: 12, kind: input, shape index: {}]
  %s13 = inlined_call_operand.vmem [shape: f32[1,32], index: 13, kind: input, shape index: {}]
  %s14 = inlined_call_operand.vmem [shape: f32[2,9,32], index: 14, kind: output, shape index: {}]
  %s15 = sld [smem:[#allocation0]]
  $region89: #{_lambda_.5} parent=0
    _
  %s17 = ssub.s32 1, %s15
  %s18 = scalar_select 0, %s17, %s15
  loop: start=0, step=1, limit=4
  $region2: #{_lambda_.5} parent=0 // loop_pre_header
    _
  $region3: #{_lambda_.5} parent=0 // loop_header
    %s20 = sphi 0, %s24
    %p21 = scmp.ge.s32.totalorder %s20, 4
    %s30 = sphi 0, %s32
    %s33 = sphi 0, %s30
    %s34 = sphi 0, %s33
    %s50 = sphi 0, %s34
    %s56 = sphi 0, %s58
    %s59 = sphi 0, %s56
    %s60 = sphi 0, %s59
    %s76 = sphi 0, %s60
    %s80 = sphi 0, %s80
    %s82 = sphi 0, %s80
    %s83 = sphi 0, %s82
    %s97 = sphi 0, %s83
    %s101 = sphi 0, %s101
    %s103 = sphi 0, %s101
    %s104 = sphi 0, %s103
    %s118 = sphi 0, %s104
    %s122 = sphi 0, %s122
    %s124 = sphi 0, %s122
    %s125 = sphi 0, %s124
    %s139 = sphi 0, %s125
    %s143 = sphi 0, %s143
    %s145 = sphi 0, %s143
    %s146 = sphi 0, %s145
    %s160 = sphi 0, %s146
    %s164 = sphi 0, %s164
    %s166 = sphi 0, %s164
    %s167 = sphi 0, %s166
    %s181 = sphi 0, %s167
    %s185 = sphi 0, %s185
    %s187 = sphi 0, %s185
    %s188 = sphi 0, %s187
    %s202 = sphi 0, %s188
    %s206 = sphi 0, %s206
    %s208 = sphi 0, %s206
    %s209 = sphi 0, %s208
    %s223 = sphi 0, %s209
    %s227 = sphi 0, %s227
    %s229 = sphi 0, %s227
    %s230 = sphi 0, %s229
    %s244 = sphi 0, %s230
    %s248 = sphi 0, %s248
    %s250 = sphi 0, %s248
    %s251 = sphi 0, %s250
    %s265 = sphi 0, %s251
    %s269 = sphi 0, %s269
    %s271 = sphi 0, %s269
    %s272 = sphi 0, %s271
    %s286 = sphi 0, %s272
    %s290 = sphi 0, %s290
    %s292 = sphi 0, %s290
    %s293 = sphi 0, %s292
    %s307 = sphi 0, %s293
    %s311 = sphi 0, %s311
    %s313 = sphi 0, %s311
    %s314 = sphi 0, %s313
    %s328 = sphi 0, %s314
    %s334 = sphi 0, %s336
    %s337 = sphi 0, %s334
    %s338 = sphi 0, %s337
    %s354 = sphi 0, %s338
  $region4: #{_lambda_.5} parent=0 // loop_header_branch
    %23 = sbr.rel (%p21) target = $region8
  $region5: #{_lambda_.5} parent=0 // loop_body
    %s25 = ssub.s32 %s20, 1
    %s26 = ssub.s32 %s20, 2
    %s27 = sadd.s32 %s20, 1
    %s28 = ssub.s32 %s20, %s27
    %p29 = scmp.eq.s32.totalorder %s28, 0
    %s31 = sadd.s32 %s30, 1
    %s32 = scalar_select %p29, %s30, %s31
    %p35 = pneg %p29
    %p36 = scmp.eq.s32.totalorder %s20, 1
    %p37 = por %p35, %p36
    %p38 = scmp.ne.s32.totalorder %s30, %s33
    %p39 = scmp.eq.s32.totalorder %s20, 0
    %p40 = por %p38, %p39
    %p41 = scmp.ne.s32.totalorder %s30, %s33
    %p42 = scmp.eq.s32.totalorder %s25, 1
    %p43 = por %p41, %p42
    %p44 = scmp.ne.s32.totalorder %s33, %s34
    %p45 = scmp.eq.s32.totalorder %s25, 0
    %p46 = por %p44, %p45
    %p47 = scmp.ne.s32.totalorder %s33, %s34
    %p48 = scmp.eq.s32.totalorder %s26, 1
    %p49 = por %p47, %p48
    %p51 = scmp.ne.s32.totalorder %s34, %s50
    %p52 = scmp.eq.s32.totalorder %s26, 0
    %p53 = por %p51, %p52
    %s54 = ssub.s32 %s20, %s27
    %p55 = scmp.eq.s32.totalorder %s54, 0
    %s57 = sadd.s32 %s56, 1
    %s58 = scalar_select %p55, %s56, %s57
    %p61 = pneg %p55
    %p62 = scmp.eq.s32.totalorder %s20, 1
    %p63 = por %p61, %p62
    %p64 = scmp.ne.s32.totalorder %s56, %s59
    %p65 = scmp.eq.s32.totalorder %s20, 0
    %p66 = por %p64, %p65
    %p67 = scmp.ne.s32.totalorder %s56, %s59
    %p68 = scmp.eq.s32.totalorder %s25, 1
    %p69 = por %p67, %p68
    %p70 = scmp.ne.s32.totalorder %s59, %s60
    %p71 = scmp.eq.s32.totalorder %s25, 0
    %p72 = por %p70, %p71
    %p73 = scmp.ne.s32.totalorder %s59, %s60
    %p74 = scmp.eq.s32.totalorder %s26, 1
    %p75 = por %p73, %p74
    %p77 = scmp.ne.s32.totalorder %s60, %s76
    %p78 = scmp.eq.s32.totalorder %s26, 0
    %p79 = por %p77, %p78
    %s81 = sadd.s32 %s80, 1
    %p84 = scmp.eq.s32.totalorder %s20, 1
    %p85 = scmp.ne.s32.totalorder %s80, %s82
    %p86 = scmp.eq.s32.totalorder %s20, 0
    %p87 = por %p85, %p86
    %p88 = scmp.ne.s32.totalorder %s80, %s82
    %p89 = scmp.eq.s32.totalorder %s25, 1
    %p90 = por %p88, %p89
    %p91 = scmp.ne.s32.totalorder %s82, %s83
    %p92 = scmp.eq.s32.totalorder %s25, 0
    %p93 = por %p91, %p92
    %p94 = scmp.ne.s32.totalorder %s82, %s83
    %p95 = scmp.eq.s32.totalorder %s26, 1
    %p96 = por %p94, %p95
    %p98 = scmp.ne.s32.totalorder %s83, %s97
    %p99 = scmp.eq.s32.totalorder %s26, 0
    %p100 = por %p98, %p99
    %s102 = sadd.s32 %s101, 1
    %p105 = scmp.eq.s32.totalorder %s20, 1
    %p106 = scmp.ne.s32.totalorder %s101, %s103
    %p107 = scmp.eq.s32.totalorder %s20, 0
    %p108 = por %p106, %p107
    %p109 = scmp.ne.s32.totalorder %s101, %s103
    %p110 = scmp.eq.s32.totalorder %s25, 1
    %p111 = por %p109, %p110
    %p112 = scmp.ne.s32.totalorder %s103, %s104
    %p113 = scmp.eq.s32.totalorder %s25, 0
    %p114 = por %p112, %p113
    %p115 = scmp.ne.s32.totalorder %s103, %s104
    %p116 = scmp.eq.s32.totalorder %s26, 1
    %p117 = por %p115, %p116
    %p119 = scmp.ne.s32.totalorder %s104, %s118
    %p120 = scmp.eq.s32.totalorder %s26, 0
    %p121 = por %p119, %p120
    %s123 = sadd.s32 %s122, 1
    %p126 = scmp.eq.s32.totalorder %s20, 1
    %p127 = scmp.ne.s32.totalorder %s122, %s124
    %p128 = scmp.eq.s32.totalorder %s20, 0
    %p129 = por %p127, %p128
    %p130 = scmp.ne.s32.totalorder %s122, %s124
    %p131 = scmp.eq.s32.totalorder %s25, 1
    %p132 = por %p130, %p131
    %p133 = scmp.ne.s32.totalorder %s124, %s125
    %p134 = scmp.eq.s32.totalorder %s25, 0
    %p135 = por %p133, %p134
    %p136 = scmp.ne.s32.totalorder %s124, %s125
    %p137 = scmp.eq.s32.totalorder %s26, 1
    %p138 = por %p136, %p137
    %p140 = scmp.ne.s32.totalorder %s125, %s139
    %p141 = scmp.eq.s32.totalorder %s26, 0
    %p142 = por %p140, %p141
    %s144 = sadd.s32 %s143, 1
    %p147 = scmp.eq.s32.totalorder %s20, 1
    %p148 = scmp.ne.s32.totalorder %s143, %s145
    %p149 = scmp.eq.s32.totalorder %s20, 0
    %p150 = por %p148, %p149
    %p151 = scmp.ne.s32.totalorder %s143, %s145
    %p152 = scmp.eq.s32.totalorder %s25, 1
    %p153 = por %p151, %p152
    %p154 = scmp.ne.s32.totalorder %s145, %s146
    %p155 = scmp.eq.s32.totalorder %s25, 0
    %p156 = por %p154, %p155
    %p157 = scmp.ne.s32.totalorder %s145, %s146
    %p158 = scmp.eq.s32.totalorder %s26, 1
    %p159 = por %p157, %p158
    %p161 = scmp.ne.s32.totalorder %s146, %s160
    %p162 = scmp.eq.s32.totalorder %s26, 0
    %p163 = por %p161, %p162
    %s165 = sadd.s32 %s164, 1
    %p168 = scmp.eq.s32.totalorder %s20, 1
    %p169 = scmp.ne.s32.totalorder %s164, %s166
    %p170 = scmp.eq.s32.totalorder %s20, 0
    %p171 = por %p169, %p170
    %p172 = scmp.ne.s32.totalorder %s164, %s166
    %p173 = scmp.eq.s32.totalorder %s25, 1
    %p174 = por %p172, %p173
    %p175 = scmp.ne.s32.totalorder %s166, %s167
    %p176 = scmp.eq.s32.totalorder %s25, 0
    %p177 = por %p175, %p176
    %p178 = scmp.ne.s32.totalorder %s166, %s167
    %p179 = scmp.eq.s32.totalorder %s26, 1
    %p180 = por %p178, %p179
    %p182 = scmp.ne.s32.totalorder %s167, %s181
    %p183 = scmp.eq.s32.totalorder %s26, 0
    %p184 = por %p182, %p183
    %s186 = sadd.s32 %s185, 1
    %p189 = scmp.eq.s32.totalorder %s20, 1
    %p190 = scmp.ne.s32.totalorder %s185, %s187
    %p191 = scmp.eq.s32.totalorder %s20, 0
    %p192 = por %p190, %p191
    %p193 = scmp.ne.s32.totalorder %s185, %s187
    %p194 = scmp.eq.s32.totalorder %s25, 1
    %p195 = por %p193, %p194
    %p196 = scmp.ne.s32.totalorder %s187, %s188
    %p197 = scmp.eq.s32.totalorder %s25, 0
    %p198 = por %p196, %p197
    %p199 = scmp.ne.s32.totalorder %s187, %s188
    %p200 = scmp.eq.s32.totalorder %s26, 1
    %p201 = por %p199, %p200
    %p203 = scmp.ne.s32.totalorder %s188, %s202
    %p204 = scmp.eq.s32.totalorder %s26, 0
    %p205 = por %p203, %p204
    %s207 = sadd.s32 %s206, 1
    %p210 = scmp.eq.s32.totalorder %s20, 1
    %p211 = scmp.ne.s32.totalorder %s206, %s208
    %p212 = scmp.eq.s32.totalorder %s20, 0
    %p213 = por %p211, %p212
    %p214 = scmp.ne.s32.totalorder %s206, %s208
    %p215 = scmp.eq.s32.totalorder %s25, 1
    %p216 = por %p214, %p215
    %p217 = scmp.ne.s32.totalorder %s208, %s209
    %p218 = scmp.eq.s32.totalorder %s25, 0
    %p219 = por %p217, %p218
    %p220 = scmp.ne.s32.totalorder %s208, %s209
    %p221 = scmp.eq.s32.totalorder %s26, 1
    %p222 = por %p220, %p221
    %p224 = scmp.ne.s32.totalorder %s209, %s223
    %p225 = scmp.eq.s32.totalorder %s26, 0
    %p226 = por %p224, %p225
    %s228 = sadd.s32 %s227, 1
    %p231 = scmp.eq.s32.totalorder %s20, 1
    %p232 = scmp.ne.s32.totalorder %s227, %s229
    %p233 = scmp.eq.s32.totalorder %s20, 0
    %p234 = por %p232, %p233
    %p235 = scmp.ne.s32.totalorder %s227, %s229
    %p236 = scmp.eq.s32.totalorder %s25, 1
    %p237 = por %p235, %p236
    %p238 = scmp.ne.s32.totalorder %s229, %s230
    %p239 = scmp.eq.s32.totalorder %s25, 0
    %p240 = por %p238, %p239
    %p241 = scmp.ne.s32.totalorder %s229, %s230
    %p242 = scmp.eq.s32.totalorder %s26, 1
    %p243 = por %p241, %p242
    %p245 = scmp.ne.s32.totalorder %s230, %s244
    %p246 = scmp.eq.s32.totalorder %s26, 0
    %p247 = por %p245, %p246
    %s249 = sadd.s32 %s248, 1
    %p252 = scmp.eq.s32.totalorder %s20, 1
    %p253 = scmp.ne.s32.totalorder %s248, %s250
    %p254 = scmp.eq.s32.totalorder %s20, 0
    %p255 = por %p253, %p254
    %p256 = scmp.ne.s32.totalorder %s248, %s250
    %p257 = scmp.eq.s32.totalorder %s25, 1
    %p258 = por %p256, %p257
    %p259 = scmp.ne.s32.totalorder %s250, %s251
    %p260 = scmp.eq.s32.totalorder %s25, 0
    %p261 = por %p259, %p260
    %p262 = scmp.ne.s32.totalorder %s250, %s251
    %p263 = scmp.eq.s32.totalorder %s26, 1
    %p264 = por %p262, %p263
    %p266 = scmp.ne.s32.totalorder %s251, %s265
    %p267 = scmp.eq.s32.totalorder %s26, 0
    %p268 = por %p266, %p267
    %s270 = sadd.s32 %s269, 1
    %p273 = scmp.eq.s32.totalorder %s20, 1
    %p274 = scmp.ne.s32.totalorder %s269, %s271
    %p275 = scmp.eq.s32.totalorder %s20, 0
    %p276 = por %p274, %p275
    %p277 = scmp.ne.s32.totalorder %s269, %s271
    %p278 = scmp.eq.s32.totalorder %s25, 1
    %p279 = por %p277, %p278
    %p280 = scmp.ne.s32.totalorder %s271, %s272
    %p281 = scmp.eq.s32.totalorder %s25, 0
    %p282 = por %p280, %p281
    %p283 = scmp.ne.s32.totalorder %s271, %s272
    %p284 = scmp.eq.s32.totalorder %s26, 1
    %p285 = por %p283, %p284
    %p287 = scmp.ne.s32.totalorder %s272, %s286
    %p288 = scmp.eq.s32.totalorder %s26, 0
    %p289 = por %p287, %p288
    %s291 = sadd.s32 %s290, 1
    %p294 = scmp.eq.s32.totalorder %s20, 1
    %p295 = scmp.ne.s32.totalorder %s290, %s292
    %p296 = scmp.eq.s32.totalorder %s20, 0
    %p297 = por %p295, %p296
    %p298 = scmp.ne.s32.totalorder %s290, %s292
    %p299 = scmp.eq.s32.totalorder %s25, 1
    %p300 = por %p298, %p299
    %p301 = scmp.ne.s32.totalorder %s292, %s293
    %p302 = scmp.eq.s32.totalorder %s25, 0
    %p303 = por %p301, %p302
    %p304 = scmp.ne.s32.totalorder %s292, %s293
    %p305 = scmp.eq.s32.totalorder %s26, 1
    %p306 = por %p304, %p305
    %p308 = scmp.ne.s32.totalorder %s293, %s307
    %p309 = scmp.eq.s32.totalorder %s26, 0
    %p310 = por %p308, %p309
    %s312 = sadd.s32 %s311, 1
    %p315 = scmp.eq.s32.totalorder %s20, 1
    %p316 = scmp.ne.s32.totalorder %s311, %s313
    %p317 = scmp.eq.s32.totalorder %s20, 0
    %p318 = por %p316, %p317
    %p319 = scmp.ne.s32.totalorder %s311, %s313
    %p320 = scmp.eq.s32.totalorder %s25, 1
    %p321 = por %p319, %p320
    %p322 = scmp.ne.s32.totalorder %s313, %s314
    %p323 = scmp.eq.s32.totalorder %s25, 0
    %p324 = por %p322, %p323
    %p325 = scmp.ne.s32.totalorder %s313, %s314
    %p326 = scmp.eq.s32.totalorder %s26, 1
    %p327 = por %p325, %p326
    %p329 = scmp.ne.s32.totalorder %s314, %s328
    %p330 = scmp.eq.s32.totalorder %s26, 0
    %p331 = por %p329, %p330
    %s332 = ssub.s32 %s20, %s27
    %p333 = scmp.eq.s32.totalorder %s332, 0
    %s335 = sadd.s32 %s334, 1
    %s336 = scalar_select %p333, %s334, %s335
    %p339 = pneg %p333
    %p340 = scmp.eq.s32.totalorder %s20, 1
    %p341 = por %p339, %p340
    %p342 = scmp.ne.s32.totalorder %s334, %s337
    %p343 = scmp.eq.s32.totalorder %s20, 0
    %p344 = por %p342, %p343
    %p345 = scmp.ne.s32.totalorder %s334, %s337
    %p346 = scmp.eq.s32.totalorder %s25, 1
    %p347 = por %p345, %p346
    %p348 = scmp.ne.s32.totalorder %s337, %s338
    %p349 = scmp.eq.s32.totalorder %s25, 0
    %p350 = por %p348, %p349
    %p351 = scmp.ne.s32.totalorder %s337, %s338
    %p352 = scmp.eq.s32.totalorder %s26, 1
    %p353 = por %p351, %p352
    %p355 = scmp.ne.s32.totalorder %s338, %s354
    %p356 = scmp.eq.s32.totalorder %s26, 0
    %p357 = por %p355, %p356
    %p358 = scmp.le.s32.totalorder 1, %s20
    %p359 = scmp.lt.s32.totalorder %s20, 3
    %p360 = pnand %p358, %p359
    %p361 = pneg %p360
    // Predicated region
    $region9: #{_lambda_.5} parent=5 // pred_check
      _
    $region10: #{_lambda_.5} parent=5 // pred_check_branch
      %363 = sbr.rel (%p360) target = $region12
    $region11: #{_lambda_.5} parent=5 // pred_region
      %s364 = ssub.s32 %s20, 1
      // Predicated region
      $region13: #{_lambda_.5} parent=11 // pred_check
        %p365 = pneg %p93
      $region14: #{_lambda_.5} parent=11 // pred_check_branch
        %367 = sbr.rel (%p365) target = $region16
      $region15: #{_lambda_.5} parent=11 // pred_region
        _
      $region16: #{_lambda_.5} parent=11 // pred_fallthru
        _
      // Predicated region
      $region17: #{_lambda_.5} parent=11 // pred_check
        %p368 = pneg %p114
      $region18: #{_lambda_.5} parent=11 // pred_check_branch
        %370 = sbr.rel (%p368) target = $region20
      $region19: #{_lambda_.5} parent=11 // pred_region
        _
      $region20: #{_lambda_.5} parent=11 // pred_fallthru
        _
      // Predicated region
      $region21: #{_lambda_.5} parent=11 // pred_check
        %p371 = pneg %p135
      $region22: #{_lambda_.5} parent=11 // pred_check_branch
        %373 = sbr.rel (%p371) target = $region24
      $region23: #{_lambda_.5} parent=11 // pred_region
        _
      $region24: #{_lambda_.5} parent=11 // pred_fallthru
        _
      // Predicated region
      $region25: #{_lambda_.5} parent=11 // pred_check
        %p374 = pneg %p156
      $region26: #{_lambda_.5} parent=11 // pred_check_branch
        %376 = sbr.rel (%p374) target = $region28
      $region27: #{_lambda_.5} parent=11 // pred_region
        _
      $region28: #{_lambda_.5} parent=11 // pred_fallthru
        _
      // Predicated region
      $region29: #{_lambda_.5} parent=11 // pred_check
        %p377 = pneg %p177
      $region30: #{_lambda_.5} parent=11 // pred_check_branch
        %379 = sbr.rel (%p377) target = $region32
      $region31: #{_lambda_.5} parent=11 // pred_region
        _
      $region32: #{_lambda_.5} parent=11 // pred_fallthru
        _
      // Predicated region
      $region33: #{_lambda_.5} parent=11 // pred_check
        %p380 = pneg %p198
      $region34: #{_lambda_.5} parent=11 // pred_check_branch
        %382 = sbr.rel (%p380) target = $region36
      $region35: #{_lambda_.5} parent=11 // pred_region
        _
      $region36: #{_lambda_.5} parent=11 // pred_fallthru
        _
      // Predicated region
      $region37: #{_lambda_.5} parent=11 // pred_check
        %p383 = pneg %p219
      $region38: #{_lambda_.5} parent=11 // pred_check_branch
        %385 = sbr.rel (%p383) target = $region40
      $region39: #{_lambda_.5} parent=11 // pred_region
        _
      $region40: #{_lambda_.5} parent=11 // pred_fallthru
        _
      // Predicated region
      $region41: #{_lambda_.5} parent=11 // pred_check
        %p386 = pneg %p240
      $region42: #{_lambda_.5} parent=11 // pred_check_branch
        %388 = sbr.rel (%p386) target = $region44
      $region43: #{_lambda_.5} parent=11 // pred_region
        _
      $region44: #{_lambda_.5} parent=11 // pred_fallthru
        _
      // Predicated region
      $region45: #{_lambda_.5} parent=11 // pred_check
        %p389 = pneg %p261
      $region46: #{_lambda_.5} parent=11 // pred_check_branch
        %391 = sbr.rel (%p389) target = $region48
      $region47: #{_lambda_.5} parent=11 // pred_region
        _
      $region48: #{_lambda_.5} parent=11 // pred_fallthru
        _
      // Predicated region
      $region49: #{_lambda_.5} parent=11 // pred_check
        %p392 = pneg %p282
      $region50: #{_lambda_.5} parent=11 // pred_check_branch
        %394 = sbr.rel (%p392) target = $region52
      $region51: #{_lambda_.5} parent=11 // pred_region
        _
      $region52: #{_lambda_.5} parent=11 // pred_fallthru
        _
      // Predicated region
      $region53: #{_lambda_.5} parent=11 // pred_check
        %p395 = pneg %p303
      $region54: #{_lambda_.5} parent=11 // pred_check_branch
        %397 = sbr.rel (%p395) target = $region56
      $region55: #{_lambda_.5} parent=11 // pred_region
        _
      $region56: #{_lambda_.5} parent=11 // pred_fallthru
        _
      // Predicated region
      $region57: #{_lambda_.5} parent=11 // pred_check
        %p398 = pneg %p324
      $region58: #{_lambda_.5} parent=11 // pred_check_branch
        %400 = sbr.rel (%p398) target = $region60
      $region59: #{_lambda_.5} parent=11 // pred_region
        _
      $region60: #{_lambda_.5} parent=11 // pred_fallthru
        _
    $region12: #{_lambda_.5} parent=5 // pred_fallthru
      _
    %p401 = scmp.lt.s32.totalorder %s20, 2
    // Predicated region
    $region61: #{_lambda_.5} parent=5 // pred_check
      %p402 = pneg %p401
    $region62: #{_lambda_.5} parent=5 // pred_check_branch
      %404 = sbr.rel (%p402) target = $region64
    $region63: #{_lambda_.5} parent=5 // pred_region
      // Predicated region
      $region65: #{_lambda_.5} parent=63 // pred_check
        %p405 = pneg %p40
      $region66: #{_lambda_.5} parent=63 // pred_check_branch
        %407 = sbr.rel (%p405) target = $region68
      $region67: #{_lambda_.5} parent=63 // pred_region
        %p408 = scmp.lt.s32.totalorder %s20, 1
        %s409 = scalar_select %p408, %s20, 1
        %s410 = smul.addr %s409, 2
        %s411 = smul.addr %s410, 8
        %s412 = scalar_lea.vmem %s0, %s411
      $region68: #{_lambda_.5} parent=63 // pred_fallthru
        _
      // Predicated region
      $region69: #{_lambda_.5} parent=63 // pred_check
        %p413 = pneg %p66
      $region70: #{_lambda_.5} parent=63 // pred_check_branch
        %415 = sbr.rel (%p413) target = $region72
      $region71: #{_lambda_.5} parent=63 // pred_region
        %p416 = scmp.lt.s32.totalorder %s20, 1
        %s417 = scalar_select %p416, %s20, 1
        %s418 = scalar_lea.vmem %s1, %s417
      $region72: #{_lambda_.5} parent=63 // pred_fallthru
        _
    $region64: #{_lambda_.5} parent=5 // pred_fallthru
      _
    %p419 = scmp.le.s32.totalorder 1, %s20
    %p420 = scmp.lt.s32.totalorder %s20, 3
    %p421 = pnand %p419, %p420
    %p422 = pneg %p421
    // Predicated region
    $region73: #{_lambda_.5} parent=5 // pred_check
      _
    $region74: #{_lambda_.5} parent=5 // pred_check_branch
      %424 = sbr.rel (%p421) target = $region76
    $region75: #{_lambda_.5} parent=5 // pred_region
      %s425 = ssub.s32 %s20, 1
      %p426 = scmp.lt.s32.totalorder %s25, 1
      %s427 = scalar_select %p426, %s25, 1
      %s428 = smul.addr %s427, 2
      %s429 = smul.addr %s428, 8
      %s430 = scalar_lea.vmem %s0, %s429
      %p431 = pneg %p46
      %p432 = pneg %p43
      %p433 = scmp.lt.s32.totalorder %s25, 1
      %s434 = scalar_select %p433, %s25, 1
      %s435 = scalar_lea.vmem %s1, %s434
      %p436 = pneg %p72
      %p437 = pneg %p69
      %p438 = pneg %p93
      %p439 = pneg %p90
      %p440 = pneg %p114
      %p441 = pneg %p111
      %p442 = pneg %p135
      %p443 = pneg %p132
      %p444 = pneg %p156
      %p445 = pneg %p153
      %p446 = pneg %p177
      %p447 = pneg %p174
      %p448 = pneg %p198
      %p449 = pneg %p195
      %p450 = pneg %p219
      %p451 = pneg %p216
      %p452 = pneg %p240
      %p453 = pneg %p237
      %p454 = pneg %p261
      %p455 = pneg %p258
      %p456 = pneg %p282
      %p457 = pneg %p279
      %p458 = pneg %p303
      %p459 = pneg %p300
      %p460 = pneg %p324
      %p461 = pneg %p321
      %p462 = pneg %p350
      %p463 = pneg %p347
      %p464 = scmp.lt.s32.totalorder %s25, 1
      %s465 = scalar_select %p464, %s25, 1
      %s466 = smul.addr %s465, 2
      %s467 = smul.addr %s466, 8
      %s468 = scalar_lea.vmem %s14, %s467
      %p469 = scmp.lt.s32.totalorder %s25, 1
      %s470 = scalar_select %p469, %s25, 1
      %s471 = smul.addr %s470, 2
      %s472 = smul.addr %s471, 8
      %s473 = scalar_lea.vmem %s0, %s472
      %p474 = scmp.lt.s32.totalorder %s25, 1
      %s475 = scalar_select %p474, %s25, 1
      %s476 = scalar_lea.vmem %s1, %s475
      %p477 = scmp.lt.s32.totalorder %s25, 1
      %s478 = scalar_select %p477, %s25, 1
      %s479 = smul.addr %s478, 2
      %s480 = smul.addr %s479, 8
      %s481 = scalar_lea.vmem %s14, %s480
      %v483 = vld [vmem:[%s473] sm:$0xff]
      %v484 = vld [vmem:[%s473 + $0x8] sm:$0x1]
      %v485 = vld [vmem:[%s476] sm:$0x1]
      %v486 = vpack.c.bf16 %v484, %v483
      %v487 = vld [vmem:[%s2] sm:$0xf]
      %v488 = vld [vmem:[%s2 + $0x4] sm:$0xf]
      %v489 = vld [vmem:[%s2 + $0x8] sm:$0xf]
      %v490 = vld [vmem:[%s2 + $0xc] sm:$0xf]
      %v491 = vld [vmem:[%s3] sm:$0x1]
      %v493 = vlaneseq
      %v494 = vshrl.u32 %v493, 7
      %v495 = vsub.s32 0, %v494
      %v496 = vrot.slane %v491, %v495
      %v502 = vunpack.c.l.b16 %v487
      %v503 = vunpack.c.l.b16 %v488
      %v504 = vunpack.c.l.b16 %v489
      %v505 = vunpack.c.l.b16 %v490
      %v506 = vpack.c.b16 %v503, %v502
      %v507 = vpack.c.b16 %v505, %v504
      %vm510 = vcmask 261120
      %v512 = vsel %vm510, %v486, 0
      %514 = vmatprep.subr.bf16.mxu0 0
      %515 = vmatpush1.bf16.msra.mxu0 0
      %516 = vmatprep.subr.bf16.mxu0 0
      %517 = vmatpush1.bf16.msra.mxu0 0
      %518 = vmatprep.subr.bf16.mxu0 0
      %519 = vmatpush1.bf16.msra.mxu0 0
      %520 = vmatprep.subr.bf16.mxu0 0
      %521 = vmatpush1.bf16.msra.mxu0 0
      %522 = vmatprep.subr.bf16.mxu0 0
      %523 = vmatpush1.bf16.msra.mxu0 0
      %524 = vmatprep.subr.bf16.mxu0 0
      %525 = vmatpush1.bf16.msra.mxu0 0
      %526 = vmatprep.subr.bf16.mxu0 0
      %527 = vmatpush1.bf16.msra.mxu0 %v507
      %528 = vmatprep.subr.bf16.mxu0 0
      %529 = vmatpush1.bf16.msra.mxu0 %v506
      %530 = vmatprep.subr.bf16.mxu0 0
      %531 = vmatpush2.bf16.msra.mxu0 0
      %532 = vmatprep.subr.bf16.mxu0 0
      %533 = vmatpush2.bf16.msra.mxu0 0
      %534 = vmatprep.subr.bf16.mxu0 0
      %535 = vmatpush2.bf16.msra.mxu0 0
      %536 = vmatprep.subr.bf16.mxu0 0
      %537 = vmatpush2.bf16.msra.mxu0 0
      %538 = vmatprep.subr.bf16.mxu0 0
      %539 = vmatpush2.bf16.msra.mxu0 0
      %540 = vmatprep.subr.bf16.mxu0 0
      %541 = vmatpush2.bf16.msra.mxu0 0
      %542 = vmatprep.subr.bf16.mxu0 0
      %543 = vmatpush2.bf16.msra.mxu0 0
      %544 = vmatprep.subr.bf16.mxu0 0
      %545 = vmatpush2.bf16.msra.mxu0 0
      %546 = vmatprep.mubr.bf16.mxu0 0
      %547 = vmatmul.mubr.bf16.gmra.mxu0 %v512
      %v548 = vpop.f32.mrf.mxu0
      %v549 = vadd.f32 %v496, %v548
      %v550 = vpop.f32.mrf.mxu0
      %v551 = vpop.f32.mrf.mxu0
      %v552 = vadd.f32 %v496, %v551
      %v553 = vpop.f32.mrf.mxu0
      %554 = vdwg.mxu0
      %557 = vrot.lane.b32.xlu0 %v549, 120
      %v558 = vpop.permute.xlu0 %557
      %559 = vrot.lane.b32.xlu0 %v552, 120
      %v560 = vpop.permute.xlu0 %559
      %561 = vrot.lane.b32.xlu0 %v549, 112
      %v562 = vpop.permute.xlu0 %561
      %563 = vrot.lane.b32.xlu0 %v552, 112
      %v564 = vpop.permute.xlu0 %563
      %565 = vrot.lane.b32.xlu0 %v549, 104
      %v566 = vpop.permute.xlu0 %565
      %567 = vrot.lane.b32.xlu0 %v552, 104
      %v568 = vpop.permute.xlu0 %567
      %569 = vrot.lane.b32.xlu0 %v549, 96
      %v570 = vpop.permute.xlu0 %569
      %571 = vrot.lane.b32.xlu0 %v552, 96
      %v572 = vpop.permute.xlu0 %571
      %vm573 = vcmask 64512
      %v574 = vsel %vm573, %v549, 0
      %v576 = vsel %vm573, %v552, 0
      %v578 = vsel %vm573, %v570, 0
      %v580 = vsel %vm573, %v572, 0
      %582 = vmatprep.subr.mxu0 0.0
      %583 = vmatpush1.xpose.msra.mxu0 0.0
      %584 = vmatprep.subr.mxu0 0.0
      %585 = vmatpush1.xpose.msra.mxu0 0.0
      %586 = vmatprep.subr.mxu0 0.0
      %587 = vmatpush1.xpose.msra.mxu0 0.0
      %588 = vmatprep.subr.mxu0 0.0
      %589 = vmatpush1.xpose.msra.mxu0 0.0
      %590 = vmatprep.subr.mxu0 0.0
      %591 = vmatpush1.xpose.msra.mxu0 0.0
      %592 = vmatprep.subr.mxu0 0.0
      %593 = vmatpush1.xpose.msra.mxu0 0.0
      %594 = vmatprep.subr.mxu0 0.0
      %595 = vmatpush1.xpose.msra.mxu0 0.0
      %596 = vmatprep.subr.mxu0 0.0
      %597 = vmatpush1.xpose.msra.mxu0 0.0
      %598 = vmatprep.subr.mxu0 0.0
      %599 = vmatpush1.xpose.msra.mxu0 0.0
      %600 = vmatprep.subr.mxu0 0.0
      %601 = vmatpush1.xpose.msra.mxu0 0.0
      %602 = vmatprep.subr.mxu0 0.0
      %603 = vmatpush1.xpose.msra.mxu0 0.0
      %604 = vmatprep.subr.mxu0 0.0
      %605 = vmatpush1.xpose.msra.mxu0 0.0
      %606 = vmatprep.subr.mxu0 0.0
      %607 = vmatpush1.xpose.msra.mxu0 0.0
      %608 = vmatprep.subr.mxu0 0.0
      %609 = vmatpush1.xpose.msra.mxu0 0.0
      %610 = vmatprep.subr.mxu0 0.0
      %611 = vmatpush1.xpose.msra.mxu0 %v580
      %612 = vmatprep.subr.mxu0 0.0
      %613 = vmatpush1.xpose.msra.mxu0 %v578
      %614 = vmatprep.subr.mxu0 0.0
      %615 = vmatpush2.xpose.msra.mxu0 0.0
      %616 = vmatprep.subr.mxu0 0.0
      %617 = vmatpush2.xpose.msra.mxu0 0.0
      %618 = vmatprep.subr.mxu0 0.0
      %619 = vmatpush2.xpose.msra.mxu0 0.0
      %620 = vmatprep.subr.mxu0 0.0
      %621 = vmatpush2.xpose.msra.mxu0 0.0
      %622 = vmatprep.subr.mxu0 0.0
      %623 = vmatpush2.xpose.msra.mxu0 0.0
      %624 = vmatprep.subr.mxu0 0.0
      %625 = vmatpush2.xpose.msra.mxu0 0.0
      %626 = vmatprep.subr.mxu0 0.0
      %627 = vmatpush2.xpose.msra.mxu0 0.0
      %628 = vmatprep.subr.mxu0 0.0
      %629 = vmatpush2.xpose.msra.mxu0 0.0
      %630 = vmatprep.subr.mxu0 0.0
      %631 = vmatpush2.xpose.msra.mxu0 0.0
      %632 = vmatprep.subr.mxu0 0.0
      %633 = vmatpush2.xpose.msra.mxu0 0.0
      %634 = vmatprep.subr.mxu0 0.0
      %635 = vmatpush2.xpose.msra.mxu0 0.0
      %636 = vmatprep.subr.mxu0 0.0
      %637 = vmatpush2.xpose.msra.mxu0 0.0
      %638 = vmatprep.subr.mxu0 0.0
      %639 = vmatpush2.xpose.msra.mxu0 0.0
      %640 = vmatprep.subr.mxu0 0.0
      %641 = vmatpush2.xpose.msra.mxu0 0.0
      %642 = vmatprep.subr.mxu0 0.0
      %643 = vmatpush2.xpose.msra.mxu0 0.0
      %644 = vmatprep.subr.mxu0 0.0
      %645 = vmatpush2.xpose.msra.mxu0 0.0
      %646 = vmatprep.mubr.f32.mxu0 0.0
      %647 = vmatmul.mubr.f32.gmra.mxu0 %v574
      %v648 = vpop.f32.mrf.mxu0
      %v649 = vadd.f32 0.0, %v648
      %v650 = vpop.f32.mrf.mxu0
      %651 = vmatprep.mubr.f32.mxu0 0.0
      %652 = vmatmul.mubr.f32.gmra.mxu0 %v576
      %v653 = vpop.f32.mrf.mxu0
      %v654 = vadd.f32 0.0, %v653
      %v655 = vpop.f32.mrf.mxu0
      %656 = vdwg.mxu0
      %657 = vrot.lane.b32.xlu0 %v558, 96
      %v658 = vpop.permute.xlu0 %657
      %659 = vrot.lane.b32.xlu0 %v560, 96
      %v660 = vpop.permute.xlu0 %659
      %v661 = vsel %vm573, %v558, 0
      %v663 = vsel %vm573, %v560, 0
      %v665 = vsel %vm573, %v658, 0
      %v667 = vsel %vm573, %v660, 0
      %669 = vmatprep.subr.mxu0 0.0
      %670 = vmatpush1.xpose.msra.mxu0 0.0
      %671 = vmatprep.subr.mxu0 0.0
      %672 = vmatpush1.xpose.msra.mxu0 0.0
      %673 = vmatprep.subr.mxu0 0.0
      %674 = vmatpush1.xpose.msra.mxu0 0.0
      %675 = vmatprep.subr.mxu0 0.0
      %676 = vmatpush1.xpose.msra.mxu0 0.0
      %677 = vmatprep.subr.mxu0 0.0
      %678 = vmatpush1.xpose.msra.mxu0 0.0
      %679 = vmatprep.subr.mxu0 0.0
      %680 = vmatpush1.xpose.msra.mxu0 0.0
      %681 = vmatprep.subr.mxu0 0.0
      %682 = vmatpush1.xpose.msra.mxu0 0.0
      %683 = vmatprep.subr.mxu0 0.0
      %684 = vmatpush1.xpose.msra.mxu0 0.0
      %685 = vmatprep.subr.mxu0 0.0
      %686 = vmatpush1.xpose.msra.mxu0 0.0
      %687 = vmatprep.subr.mxu0 0.0
      %688 = vmatpush1.xpose.msra.mxu0 0.0
      %689 = vmatprep.subr.mxu0 0.0
      %690 = vmatpush1.xpose.msra.mxu0 0.0
      %691 = vmatprep.subr.mxu0 0.0
      %692 = vmatpush1.xpose.msra.mxu0 0.0
      %693 = vmatprep.subr.mxu0 0.0
      %694 = vmatpush1.xpose.msra.mxu0 0.0
      %695 = vmatprep.subr.mxu0 0.0
      %696 = vmatpush1.xpose.msra.mxu0 0.0
      %697 = vmatprep.subr.mxu0 0.0
      %698 = vmatpush1.xpose.msra.mxu0 %v667
      %699 = vmatprep.subr.mxu0 0.0
      %700 = vmatpush1.xpose.msra.mxu0 %v665
      %701 = vmatprep.subr.mxu0 0.0
      %702 = vmatpush2.xpose.msra.mxu0 0.0
      %703 = vmatprep.subr.mxu0 0.0
      %704 = vmatpush2.xpose.msra.mxu0 0.0
      %705 = vmatprep.subr.mxu0 0.0
      %706 = vmatpush2.xpose.msra.mxu0 0.0
      %707 = vmatprep.subr.mxu0 0.0
      %708 = vmatpush2.xpose.msra.mxu0 0.0
      %709 = vmatprep.subr.mxu0 0.0
      %710 = vmatpush2.xpose.msra.mxu0 0.0
      %711 = vmatprep.subr.mxu0 0.0
      %712 = vmatpush2.xpose.msra.mxu0 0.0
      %713 = vmatprep.subr.mxu0 0.0
      %714 = vmatpush2.xpose.msra.mxu0 0.0
      %715 = vmatprep.subr.mxu0 0.0
      %716 = vmatpush2.xpose.msra.mxu0 0.0
      %717 = vmatprep.subr.mxu0 0.0
      %718 = vmatpush2.xpose.msra.mxu0 0.0
      %719 = vmatprep.subr.mxu0 0.0
      %720 = vmatpush2.xpose.msra.mxu0 0.0
      %721 = vmatprep.subr.mxu0 0.0
      %722 = vmatpush2.xpose.msra.mxu0 0.0
      %723 = vmatprep.subr.mxu0 0.0
      %724 = vmatpush2.xpose.msra.mxu0 0.0
      %725 = vmatprep.subr.mxu0 0.0
      %726 = vmatpush2.xpose.msra.mxu0 0.0
      %727 = vmatprep.subr.mxu0 0.0
      %728 = vmatpush2.xpose.msra.mxu0 0.0
      %729 = vmatprep.subr.mxu0 0.0
      %730 = vmatpush2.xpose.msra.mxu0 0.0
      %731 = vmatprep.subr.mxu0 0.0
      %732 = vmatpush2.xpose.msra.mxu0 0.0
      %733 = vmatprep.mubr.f32.mxu0 0.0
      %734 = vmatmul.mubr.f32.gmra.mxu0 %v661
      %v735 = vpop.f32.mrf.mxu0
      %v736 = vadd.f32 0.0, %v735
      %v737 = vpop.f32.mrf.mxu0
      %738 = vmatprep.mubr.f32.mxu0 0.0
      %739 = vmatmul.mubr.f32.gmra.mxu0 %v663
      %v740 = vpop.f32.mrf.mxu0
      %v741 = vadd.f32 0.0, %v740
      %v742 = vpop.f32.mrf.mxu0
      %743 = vdwg.mxu0
      %744 = vrot.lane.b32.xlu0 %v562, 96
      %v745 = vpop.permute.xlu0 %744
      %746 = vrot.lane.b32.xlu0 %v564, 96
      %v747 = vpop.permute.xlu0 %746
      %v748 = vsel %vm573, %v562, 0
      %v750 = vsel %vm573, %v564, 0
      %v752 = vsel %vm573, %v745, 0
      %v754 = vsel %vm573, %v747, 0
      %756 = vmatprep.subr.mxu0 0.0
      %757 = vmatpush1.xpose.msra.mxu0 0.0
      %758 = vmatprep.subr.mxu0 0.0
      %759 = vmatpush1.xpose.msra.mxu0 0.0
      %760 = vmatprep.subr.mxu0 0.0
      %761 = vmatpush1.xpose.msra.mxu0 0.0
      %762 = vmatprep.subr.mxu0 0.0
      %763 = vmatpush1.xpose.msra.mxu0 0.0
      %764 = vmatprep.subr.mxu0 0.0
      %765 = vmatpush1.xpose.msra.mxu0 0.0
      %766 = vmatprep.subr.mxu0 0.0
      %767 = vmatpush1.xpose.msra.mxu0 0.0
      %768 = vmatprep.subr.mxu0 0.0
      %769 = vmatpush1.xpose.msra.mxu0 0.0
      %770 = vmatprep.subr.mxu0 0.0
      %771 = vmatpush1.xpose.msra.mxu0 0.0
      %772 = vmatprep.subr.mxu0 0.0
      %773 = vmatpush1.xpose.msra.mxu0 0.0
      %774 = vmatprep.subr.mxu0 0.0
      %775 = vmatpush1.xpose.msra.mxu0 0.0
      %776 = vmatprep.subr.mxu0 0.0
      %777 = vmatpush1.xpose.msra.mxu0 0.0
      %778 = vmatprep.subr.mxu0 0.0
      %779 = vmatpush1.xpose.msra.mxu0 0.0
      %780 = vmatprep.subr.mxu0 0.0
      %781 = vmatpush1.xpose.msra.mxu0 0.0
      %782 = vmatprep.subr.mxu0 0.0
      %783 = vmatpush1.xpose.msra.mxu0 0.0
      %784 = vmatprep.subr.mxu0 0.0
      %785 = vmatpush1.xpose.msra.mxu0 %v754
      %786 = vmatprep.subr.mxu0 0.0
      %787 = vmatpush1.xpose.msra.mxu0 %v752
      %788 = vmatprep.subr.mxu0 0.0
      %789 = vmatpush2.xpose.msra.mxu0 0.0
      %790 = vmatprep.subr.mxu0 0.0
      %791 = vmatpush2.xpose.msra.mxu0 0.0
      %792 = vmatprep.subr.mxu0 0.0
      %793 = vmatpush2.xpose.msra.mxu0 0.0
      %794 = vmatprep.subr.mxu0 0.0
      %795 = vmatpush2.xpose.msra.mxu0 0.0
      %796 = vmatprep.subr.mxu0 0.0
      %797 = vmatpush2.xpose.msra.mxu0 0.0
      %798 = vmatprep.subr.mxu0 0.0
      %799 = vmatpush2.xpose.msra.mxu0 0.0
      %800 = vmatprep.subr.mxu0 0.0
      %801 = vmatpush2.xpose.msra.mxu0 0.0
      %802 = vmatprep.subr.mxu0 0.0
      %803 = vmatpush2.xpose.msra.mxu0 0.0
      %804 = vmatprep.subr.mxu0 0.0
      %805 = vmatpush2.xpose.msra.mxu0 0.0
      %806 = vmatprep.subr.mxu0 0.0
      %807 = vmatpush2.xpose.msra.mxu0 0.0
      %808 = vmatprep.subr.mxu0 0.0
      %809 = vmatpush2.xpose.msra.mxu0 0.0
      %810 = vmatprep.subr.mxu0 0.0
      %811 = vmatpush2.xpose.msra.mxu0 0.0
      %812 = vmatprep.subr.mxu0 0.0
      %813 = vmatpush2.xpose.msra.mxu0 0.0
      %814 = vmatprep.subr.mxu0 0.0
      %815 = vmatpush2.xpose.msra.mxu0 0.0
      %816 = vmatprep.subr.mxu0 0.0
      %817 = vmatpush2.xpose.msra.mxu0 0.0
      %818 = vmatprep.subr.mxu0 0.0
      %819 = vmatpush2.xpose.msra.mxu0 0.0
      %820 = vmatprep.mubr.f32.mxu0 0.0
      %821 = vmatmul.mubr.f32.gmra.mxu0 %v748
      %v822 = vpop.f32.mrf.mxu0
      %v823 = vadd.f32 0.0, %v822
      %v824 = vpop.f32.mrf.mxu0
      %825 = vmatprep.mubr.f32.mxu0 0.0
      %826 = vmatmul.mubr.f32.gmra.mxu0 %v750
      %v827 = vpop.f32.mrf.mxu0
      %v828 = vadd.f32 0.0, %v827
      %v829 = vpop.f32.mrf.mxu0
      %830 = vdwg.mxu0
      %831 = vrot.lane.b32.xlu0 %v566, 96
      %v832 = vpop.permute.xlu0 %831
      %833 = vrot.lane.b32.xlu0 %v568, 96
      %v834 = vpop.permute.xlu0 %833
      %v835 = vsel %vm573, %v566, 0
      %v837 = vsel %vm573, %v568, 0
      %v839 = vsel %vm573, %v832, 0
      %v841 = vsel %vm573, %v834, 0
      %843 = vmatprep.subr.mxu0 0.0
      %844 = vmatpush1.xpose.msra.mxu0 0.0
      %845 = vmatprep.subr.mxu0 0.0
      %846 = vmatpush1.xpose.msra.mxu0 0.0
      %847 = vmatprep.subr.mxu0 0.0
      %848 = vmatpush1.xpose.msra.mxu0 0.0
      %849 = vmatprep.subr.mxu0 0.0
      %850 = vmatpush1.xpose.msra.mxu0 0.0
      %851 = vmatprep.subr.mxu0 0.0
      %852 = vmatpush1.xpose.msra.mxu0 0.0
      %853 = vmatprep.subr.mxu0 0.0
      %854 = vmatpush1.xpose.msra.mxu0 0.0
      %855 = vmatprep.subr.mxu0 0.0
      %856 = vmatpush1.xpose.msra.mxu0 0.0
      %857 = vmatprep.subr.mxu0 0.0
      %858 = vmatpush1.xpose.msra.mxu0 0.0
      %859 = vmatprep.subr.mxu0 0.0
      %860 = vmatpush1.xpose.msra.mxu0 0.0
      %861 = vmatprep.subr.mxu0 0.0
      %862 = vmatpush1.xpose.msra.mxu0 0.0
      %863 = vmatprep.subr.mxu0 0.0
      %864 = vmatpush1.xpose.msra.mxu0 0.0
      %865 = vmatprep.subr.mxu0 0.0
      %866 = vmatpush1.xpose.msra.mxu0 0.0
      %867 = vmatprep.subr.mxu0 0.0
      %868 = vmatpush1.xpose.msra.mxu0 0.0
      %869 = vmatprep.subr.mxu0 0.0
      %870 = vmatpush1.xpose.msra.mxu0 0.0
      %871 = vmatprep.subr.mxu0 0.0
      %872 = vmatpush1.xpose.msra.mxu0 %v841
      %873 = vmatprep.subr.mxu0 0.0
      %874 = vmatpush1.xpose.msra.mxu0 %v839
      %875 = vmatprep.subr.mxu0 0.0
      %876 = vmatpush2.xpose.msra.mxu0 0.0
      %877 = vmatprep.subr.mxu0 0.0
      %878 = vmatpush2.xpose.msra.mxu0 0.0
      %879 = vmatprep.subr.mxu0 0.0
      %880 = vmatpush2.xpose.msra.mxu0 0.0
      %881 = vmatprep.subr.mxu0 0.0
      %882 = vmatpush2.xpose.msra.mxu0 0.0
      %883 = vmatprep.subr.mxu0 0.0
      %884 = vmatpush2.xpose.msra.mxu0 0.0
      %885 = vmatprep.subr.mxu0 0.0
      %886 = vmatpush2.xpose.msra.mxu0 0.0
      %887 = vmatprep.subr.mxu0 0.0
      %888 = vmatpush2.xpose.msra.mxu0 0.0
      %889 = vmatprep.subr.mxu0 0.0
      %890 = vmatpush2.xpose.msra.mxu0 0.0
      %891 = vmatprep.subr.mxu0 0.0
      %892 = vmatpush2.xpose.msra.mxu0 0.0
      %893 = vmatprep.subr.mxu0 0.0
      %894 = vmatpush2.xpose.msra.mxu0 0.0
      %895 = vmatprep.subr.mxu0 0.0
      %896 = vmatpush2.xpose.msra.mxu0 0.0
      %897 = vmatprep.subr.mxu0 0.0
      %898 = vmatpush2.xpose.msra.mxu0 0.0
      %899 = vmatprep.subr.mxu0 0.0
      %900 = vmatpush2.xpose.msra.mxu0 0.0
      %901 = vmatprep.subr.mxu0 0.0
      %902 = vmatpush2.xpose.msra.mxu0 0.0
      %903 = vmatprep.subr.mxu0 0.0
      %904 = vmatpush2.xpose.msra.mxu0 0.0
      %905 = vmatprep.subr.mxu0 0.0
      %906 = vmatpush2.xpose.msra.mxu0 0.0
      %907 = vmatprep.mubr.f32.mxu0 0.0
      %908 = vmatmul.mubr.f32.gmra.mxu0 %v835
      %v909 = vpop.f32.mrf.mxu0
      %v910 = vadd.f32 0.0, %v909
      %v911 = vpop.f32.mrf.mxu0
      %912 = vmatprep.mubr.f32.mxu0 0.0
      %913 = vmatmul.mubr.f32.gmra.mxu0 %v837
      %v914 = vpop.f32.mrf.mxu0
      %v915 = vadd.f32 0.0, %v914
      %v916 = vpop.f32.mrf.mxu0
      %917 = vdwg.mxu0
      %v918 = vmul.f32 %v649, 0.35355338
      %v919 = vmul.f32 %v654, 0.35355338
      %v920 = vmul.f32 %v736, 0.35355338
      %v921 = vmul.f32 %v741, 0.35355338
      %v922 = vmul.f32 %v823, 0.35355338
      %v923 = vmul.f32 %v828, 0.35355338
      %v924 = vmul.f32 %v910, 0.35355338
      %v925 = vmul.f32 %v915, 0.35355338
      %v927 = vlaneseq
      %v928 = vshrl.u32 %v927, 7
      %v929 = vsub.s32 0, %v928
      %v930 = vrot.slane %v485, %v929
      %v932 = vadd.f32 %v918, %v930
      %v933 = vadd.f32 %v919, %v930
      %v934 = vadd.f32 %v920, %v930
      %v935 = vadd.f32 %v921, %v930
      %v936 = vadd.f32 %v922, %v930
      %v937 = vadd.f32 %v923, %v930
      %v938 = vadd.f32 %v924, %v930
      %v939 = vadd.f32 %v925, %v930
      %vm940 = vcmask 72704
      %v941 = vsel %vm940, %v932, -inf
      %942 = vmax.xlane.f32.xlu0 %v941
      %v943 = vpop.xlane.xlu0 %942
      %vm944 = vcmask 65536
      %v945 = vsel %vm944, %v933, -inf
      %946 = vmax.xlane.f32.xlu0 %v945
      %v947 = vpop.xlane.xlu0 %946
      %v948 = vsel %vm940, %v934, -inf
      %949 = vmax.xlane.f32.xlu0 %v948
      %v950 = vpop.xlane.xlu0 %949
      %v951 = vsel %vm944, %v935, -inf
      %952 = vmax.xlane.f32.xlu0 %v951
      %v953 = vpop.xlane.xlu0 %952
      %v954 = vsel %vm940, %v936, -inf
      %955 = vmax.xlane.f32.xlu0 %v954
      %v956 = vpop.xlane.xlu0 %955
      %v957 = vsel %vm944, %v937, -inf
      %958 = vmax.xlane.f32.xlu0 %v957
      %v959 = vpop.xlane.xlu0 %958
      %v960 = vsel %vm940, %v938, -inf
      %961 = vmax.xlane.f32.xlu0 %v960
      %v962 = vpop.xlane.xlu0 %961
      %v963 = vsel %vm944, %v939, -inf
      %964 = vmax.xlane.f32.xlu0 %v963
      %v965 = vpop.xlane.xlu0 %964
      %v966 = vsub.f32 %v932, %v943
      %v967 = vsub.f32 %v933, %v947
      %v968 = vsub.f32 %v934, %v950
      %v969 = vsub.f32 %v935, %v953
      %v970 = vsub.f32 %v936, %v956
      %v971 = vsub.f32 %v937, %v959
      %v972 = vsub.f32 %v938, %v962
      %v973 = vsub.f32 %v939, %v965
      %v974 = vmul.f32 %v966, 1.442695
      %v975 = vpow.pop %v974
      %v976 = vmul.f32 %v967, 1.442695
      %v977 = vpow.pop %v976
      %v978 = vmul.f32 %v968, 1.442695
      %v979 = vpow.pop %v978
      %v980 = vmul.f32 %v969, 1.442695
      %v981 = vpow.pop %v980
      %v982 = vmul.f32 %v970, 1.442695
      %v983 = vpow.pop %v982
      %v984 = vmul.f32 %v971, 1.442695
      %v985 = vpow.pop %v984
      %v986 = vmul.f32 %v972, 1.442695
      %v987 = vpow.pop %v986
      %v988 = vmul.f32 %v973, 1.442695
      %v989 = vpow.pop %v988
      %v990 = vsel %vm940, %v975, 0.0
      %991 = vadd.xlane.f32.xlu0 %v990
      %v992 = vpop.xlane.xlu0 %991
      %v993 = vsel %vm944, %v977, 0.0
      %994 = vadd.xlane.f32.xlu0 %v993
      %v995 = vpop.xlane.xlu0 %994
      %v996 = vsel %vm940, %v979, 0.0
      %997 = vadd.xlane.f32.xlu0 %v996
      %v998 = vpop.xlane.xlu0 %997
      %v999 = vsel %vm944, %v981, 0.0
      %1000 = vadd.xlane.f32.xlu0 %v999
      %v1001 = vpop.xlane.xlu0 %1000
      %v1002 = vsel %vm940, %v983, 0.0
      %1003 = vadd.xlane.f32.xlu0 %v1002
      %v1004 = vpop.xlane.xlu0 %1003
      %v1005 = vsel %vm944, %v985, 0.0
      %1006 = vadd.xlane.f32.xlu0 %v1005
      %v1007 = vpop.xlane.xlu0 %1006
      %v1008 = vsel %vm940, %v987, 0.0
      %1009 = vadd.xlane.f32.xlu0 %v1008
      %v1010 = vpop.xlane.xlu0 %1009
      %v1011 = vsel %vm944, %v989, 0.0
      %1012 = vadd.xlane.f32.xlu0 %v1011
      %v1013 = vpop.xlane.xlu0 %1012
      %v1014 = vrcp.pop %v992
      %v1015 = vrcp.pop %v995
      %v1016 = vrcp.pop %v998
      %v1017 = vrcp.pop %v1001
      %v1018 = vrcp.pop %v1004
      %v1019 = vrcp.pop %v1007
      %v1020 = vrcp.pop %v1010
      %v1021 = vrcp.pop %v1013
      %v1022 = vmul.f32 %v975, %v1014
      %v1023 = vmul.f32 %v977, %v1015
      %v1024 = vmul.f32 %v979, %v1016
      %v1025 = vmul.f32 %v981, %v1017
      %v1026 = vmul.f32 %v983, %v1018
      %v1027 = vmul.f32 %v985, %v1019
      %v1028 = vmul.f32 %v987, %v1020
      %v1029 = vmul.f32 %v989, %v1021
      %1030 = vrot.lane.b32.xlu0 %v549, 64
      %v1031 = vpop.permute.xlu0 %1030
      %1032 = vrot.lane.b32.xlu0 %v552, 64
      %v1033 = vpop.permute.xlu0 %1032
      %v1036 = vsel %vm940, %v1022, 0
      %v1039 = vsel %vm940, %v1023, 0
      %vm1041 = vcmask 1040384
      %v1042 = vsel %vm1041, %v1033, 0
      %1044 = vmatprep.subr.mxu0 0.0
      %1045 = vmatpush1.msra.mxu0 0.0
      %1046 = vmatprep.subr.mxu0 0.0
      %1047 = vmatpush1.msra.mxu0 0.0
      %1048 = vmatprep.subr.mxu0 0.0
      %1049 = vmatpush1.msra.mxu0 0.0
      %1050 = vmatprep.subr.mxu0 0.0
      %1051 = vmatpush1.msra.mxu0 0.0
      %1052 = vmatprep.subr.mxu0 0.0
      %1053 = vmatpush1.msra.mxu0 0.0
      %1054 = vmatprep.subr.mxu0 0.0
      %1055 = vmatpush1.msra.mxu0 0.0
      %1056 = vmatprep.subr.mxu0 0.0
      %1057 = vmatpush1.msra.mxu0 0.0
      %1058 = vmatprep.subr.mxu0 0.0
      %1059 = vmatpush1.msra.mxu0 0.0
      %1060 = vmatprep.subr.mxu0 0.0
      %1061 = vmatpush1.msra.mxu0 0.0
      %1062 = vmatprep.subr.mxu0 0.0
      %1063 = vmatpush1.msra.mxu0 0.0
      %1064 = vmatprep.subr.mxu0 0.0
      %1065 = vmatpush1.msra.mxu0 0.0
      %1066 = vmatprep.subr.mxu0 0.0
      %1067 = vmatpush1.msra.mxu0 0.0
      %1068 = vmatprep.subr.mxu0 0.0
      %1069 = vmatpush1.msra.mxu0 0.0
      %1070 = vmatprep.subr.mxu0 0.0
      %1071 = vmatpush1.msra.mxu0 0.0
      %1072 = vmatprep.subr.mxu0 0.0
      %1073 = vmatpush1.msra.mxu0 %v1042
      %1074 = vmatprep.subr.mxu0 0.0
      %1075 = vmatpush1.msra.mxu0 %v1031
      %1076 = vmatprep.subr.mxu0 0.0
      %1077 = vmatpush2.msra.mxu0 0.0
      %1078 = vmatprep.subr.mxu0 0.0
      %1079 = vmatpush2.msra.mxu0 0.0
      %1080 = vmatprep.subr.mxu0 0.0
      %1081 = vmatpush2.msra.mxu0 0.0
      %1082 = vmatprep.subr.mxu0 0.0
      %1083 = vmatpush2.msra.mxu0 0.0
      %1084 = vmatprep.subr.mxu0 0.0
      %1085 = vmatpush2.msra.mxu0 0.0
      %1086 = vmatprep.subr.mxu0 0.0
      %1087 = vmatpush2.msra.mxu0 0.0
      %1088 = vmatprep.subr.mxu0 0.0
      %1089 = vmatpush2.msra.mxu0 0.0
      %1090 = vmatprep.subr.mxu0 0.0
      %1091 = vmatpush2.msra.mxu0 0.0
      %1092 = vmatprep.subr.mxu0 0.0
      %1093 = vmatpush2.msra.mxu0 0.0
      %1094 = vmatprep.subr.mxu0 0.0
      %1095 = vmatpush2.msra.mxu0 0.0
      %1096 = vmatprep.subr.mxu0 0.0
      %1097 = vmatpush2.msra.mxu0 0.0
      %1098 = vmatprep.subr.mxu0 0.0
      %1099 = vmatpush2.msra.mxu0 0.0
      %1100 = vmatprep.subr.mxu0 0.0
      %1101 = vmatpush2.msra.mxu0 0.0
      %1102 = vmatprep.subr.mxu0 0.0
      %1103 = vmatpush2.msra.mxu0 0.0
      %1104 = vmatprep.subr.mxu0 0.0
      %1105 = vmatpush2.msra.mxu0 0.0
      %1106 = vmatprep.subr.mxu0 0.0
      %1107 = vmatpush2.msra.mxu0 0.0
      %1108 = vmatprep.mubr.f32.mxu0 0.0
      %1109 = vmatmul.mubr.f32.gmra.mxu0 %v1036
      %v1110 = vpop.f32.mrf.mxu0
      %v1111 = vadd.f32 0.0, %v1110
      %v1112 = vpop.f32.mrf.mxu0
      %1113 = vmatprep.mubr.f32.mxu0 0.0
      %1114 = vmatmul.mubr.f32.gmra.mxu0 %v1039
      %v1115 = vpop.f32.mrf.mxu0
      %v1116 = vadd.f32 0.0, %v1115
      %v1117 = vpop.f32.mrf.mxu0
      %1118 = vdwg.mxu0
      %1119 = vrot.lane.b32.xlu0 %v558, 64
      %v1120 = vpop.permute.xlu0 %1119
      %1121 = vrot.lane.b32.xlu0 %v560, 64
      %v1122 = vpop.permute.xlu0 %1121
      %v1125 = vsel %vm940, %v1024, 0
      %v1128 = vsel %vm940, %v1025, 0
      %v1130 = vsel %vm1041, %v1122, 0
      %1132 = vmatprep.subr.mxu0 0.0
      %1133 = vmatpush1.msra.mxu0 0.0
      %1134 = vmatprep.subr.mxu0 0.0
      %1135 = vmatpush1.msra.mxu0 0.0
      %1136 = vmatprep.subr.mxu0 0.0
      %1137 = vmatpush1.msra.mxu0 0.0
      %1138 = vmatprep.subr.mxu0 0.0
      %1139 = vmatpush1.msra.mxu0 0.0
      %1140 = vmatprep.subr.mxu0 0.0
      %1141 = vmatpush1.msra.mxu0 0.0
      %1142 = vmatprep.subr.mxu0 0.0
      %1143 = vmatpush1.msra.mxu0 0.0
      %1144 = vmatprep.subr.mxu0 0.0
      %1145 = vmatpush1.msra.mxu0 0.0
      %1146 = vmatprep.subr.mxu0 0.0
      %1147 = vmatpush1.msra.mxu0 0.0
      %1148 = vmatprep.subr.mxu0 0.0
      %1149 = vmatpush1.msra.mxu0 0.0
      %1150 = vmatprep.subr.mxu0 0.0
      %1151 = vmatpush1.msra.mxu0 0.0
      %1152 = vmatprep.subr.mxu0 0.0
      %1153 = vmatpush1.msra.mxu0 0.0
      %1154 = vmatprep.subr.mxu0 0.0
      %1155 = vmatpush1.msra.mxu0 0.0
      %1156 = vmatprep.subr.mxu0 0.0
      %1157 = vmatpush1.msra.mxu0 0.0
      %1158 = vmatprep.subr.mxu0 0.0
      %1159 = vmatpush1.msra.mxu0 0.0
      %1160 = vmatprep.subr.mxu0 0.0
      %1161 = vmatpush1.msra.mxu0 %v1130
      %1162 = vmatprep.subr.mxu0 0.0
      %1163 = vmatpush1.msra.mxu0 %v1120
      %1164 = vmatprep.subr.mxu0 0.0
      %1165 = vmatpush2.msra.mxu0 0.0
      %1166 = vmatprep.subr.mxu0 0.0
      %1167 = vmatpush2.msra.mxu0 0.0
      %1168 = vmatprep.subr.mxu0 0.0
      %1169 = vmatpush2.msra.mxu0 0.0
      %1170 = vmatprep.subr.mxu0 0.0
      %1171 = vmatpush2.msra.mxu0 0.0
      %1172 = vmatprep.subr.mxu0 0.0
      %1173 = vmatpush2.msra.mxu0 0.0
      %1174 = vmatprep.subr.mxu0 0.0
      %1175 = vmatpush2.msra.mxu0 0.0
      %1176 = vmatprep.subr.mxu0 0.0
      %1177 = vmatpush2.msra.mxu0 0.0
      %1178 = vmatprep.subr.mxu0 0.0
      %1179 = vmatpush2.msra.mxu0 0.0
      %1180 = vmatprep.subr.mxu0 0.0
      %1181 = vmatpush2.msra.mxu0 0.0
      %1182 = vmatprep.subr.mxu0 0.0
      %1183 = vmatpush2.msra.mxu0 0.0
      %1184 = vmatprep.subr.mxu0 0.0
      %1185 = vmatpush2.msra.mxu0 0.0
      %1186 = vmatprep.subr.mxu0 0.0
      %1187 = vmatpush2.msra.mxu0 0.0
      %1188 = vmatprep.subr.mxu0 0.0
      %1189 = vmatpush2.msra.mxu0 0.0
      %1190 = vmatprep.subr.mxu0 0.0
      %1191 = vmatpush2.msra.mxu0 0.0
      %1192 = vmatprep.subr.mxu0 0.0
      %1193 = vmatpush2.msra.mxu0 0.0
      %1194 = vmatprep.subr.mxu0 0.0
      %1195 = vmatpush2.msra.mxu0 0.0
      %1196 = vmatprep.mubr.f32.mxu0 0.0
      %1197 = vmatmul.mubr.f32.gmra.mxu0 %v1125
      %v1198 = vpop.f32.mrf.mxu0
      %v1199 = vadd.f32 0.0, %v1198
      %v1200 = vpop.f32.mrf.mxu0
      %1201 = vmatprep.mubr.f32.mxu0 0.0
      %1202 = vmatmul.mubr.f32.gmra.mxu0 %v1128
      %v1203 = vpop.f32.mrf.mxu0
      %v1204 = vadd.f32 0.0, %v1203
      %v1205 = vpop.f32.mrf.mxu0
      %1206 = vdwg.mxu0
      %1207 = vrot.lane.b32.xlu0 %v562, 64
      %v1208 = vpop.permute.xlu0 %1207
      %1209 = vrot.lane.b32.xlu0 %v564, 64
      %v1210 = vpop.permute.xlu0 %1209
      %v1213 = vsel %vm940, %v1026, 0
      %v1216 = vsel %vm940, %v1027, 0
      %v1218 = vsel %vm1041, %v1210, 0
      %1220 = vmatprep.subr.mxu0 0.0
      %1221 = vmatpush1.msra.mxu0 0.0
      %1222 = vmatprep.subr.mxu0 0.0
      %1223 = vmatpush1.msra.mxu0 0.0
      %1224 = vmatprep.subr.mxu0 0.0
      %1225 = vmatpush1.msra.mxu0 0.0
      %1226 = vmatprep.subr.mxu0 0.0
      %1227 = vmatpush1.msra.mxu0 0.0
      %1228 = vmatprep.subr.mxu0 0.0
      %1229 = vmatpush1.msra.mxu0 0.0
      %1230 = vmatprep.subr.mxu0 0.0
      %1231 = vmatpush1.msra.mxu0 0.0
      %1232 = vmatprep.subr.mxu0 0.0
      %1233 = vmatpush1.msra.mxu0 0.0
      %1234 = vmatprep.subr.mxu0 0.0
      %1235 = vmatpush1.msra.mxu0 0.0
      %1236 = vmatprep.subr.mxu0 0.0
      %1237 = vmatpush1.msra.mxu0 0.0
      %1238 = vmatprep.subr.mxu0 0.0
      %1239 = vmatpush1.msra.mxu0 0.0
      %1240 = vmatprep.subr.mxu0 0.0
      %1241 = vmatpush1.msra.mxu0 0.0
      %1242 = vmatprep.subr.mxu0 0.0
      %1243 = vmatpush1.msra.mxu0 0.0
      %1244 = vmatprep.subr.mxu0 0.0
      %1245 = vmatpush1.msra.mxu0 0.0
      %1246 = vmatprep.subr.mxu0 0.0
      %1247 = vmatpush1.msra.mxu0 0.0
      %1248 = vmatprep.subr.mxu0 0.0
      %1249 = vmatpush1.msra.mxu0 %v1218
      %1250 = vmatprep.subr.mxu0 0.0
      %1251 = vmatpush1.msra.mxu0 %v1208
      %1252 = vmatprep.subr.mxu0 0.0
      %1253 = vmatpush2.msra.mxu0 0.0
      %1254 = vmatprep.subr.mxu0 0.0
      %1255 = vmatpush2.msra.mxu0 0.0
      %1256 = vmatprep.subr.mxu0 0.0
      %1257 = vmatpush2.msra.mxu0 0.0
      %1258 = vmatprep.subr.mxu0 0.0
      %1259 = vmatpush2.msra.mxu0 0.0
      %1260 = vmatprep.subr.mxu0 0.0
      %1261 = vmatpush2.msra.mxu0 0.0
      %1262 = vmatprep.subr.mxu0 0.0
      %1263 = vmatpush2.msra.mxu0 0.0
      %1264 = vmatprep.subr.mxu0 0.0
      %1265 = vmatpush2.msra.mxu0 0.0
      %1266 = vmatprep.subr.mxu0 0.0
      %1267 = vmatpush2.msra.mxu0 0.0
      %1268 = vmatprep.subr.mxu0 0.0
      %1269 = vmatpush2.msra.mxu0 0.0
      %1270 = vmatprep.subr.mxu0 0.0
      %1271 = vmatpush2.msra.mxu0 0.0
      %1272 = vmatprep.subr.mxu0 0.0
      %1273 = vmatpush2.msra.mxu0 0.0
      %1274 = vmatprep.subr.mxu0 0.0
      %1275 = vmatpush2.msra.mxu0 0.0
      %1276 = vmatprep.subr.mxu0 0.0
      %1277 = vmatpush2.msra.mxu0 0.0
      %1278 = vmatprep.subr.mxu0 0.0
      %1279 = vmatpush2.msra.mxu0 0.0
      %1280 = vmatprep.subr.mxu0 0.0
      %1281 = vmatpush2.msra.mxu0 0.0
      %1282 = vmatprep.subr.mxu0 0.0
      %1283 = vmatpush2.msra.mxu0 0.0
      %1284 = vmatprep.mubr.f32.mxu0 0.0
      %1285 = vmatmul.mubr.f32.gmra.mxu0 %v1213
      %v1286 = vpop.f32.mrf.mxu0
      %v1287 = vadd.f32 0.0, %v1286
      %v1288 = vpop.f32.mrf.mxu0
      %1289 = vmatprep.mubr.f32.mxu0 0.0
      %1290 = vmatmul.mubr.f32.gmra.mxu0 %v1216
      %v1291 = vpop.f32.mrf.mxu0
      %v1292 = vadd.f32 0.0, %v1291
      %v1293 = vpop.f32.mrf.mxu0
      %1294 = vdwg.mxu0
      %1295 = vrot.lane.b32.xlu0 %v566, 64
      %v1296 = vpop.permute.xlu0 %1295
      %1297 = vrot.lane.b32.xlu0 %v568, 64
      %v1298 = vpop.permute.xlu0 %1297
      %v1301 = vsel %vm940, %v1028, 0
      %v1304 = vsel %vm940, %v1029, 0
      %v1306 = vsel %vm1041, %v1298, 0
      %1308 = vmatprep.subr.mxu0 0.0
      %1309 = vmatpush1.msra.mxu0 0.0
      %1310 = vmatprep.subr.mxu0 0.0
      %1311 = vmatpush1.msra.mxu0 0.0
      %1312 = vmatprep.subr.mxu0 0.0
      %1313 = vmatpush1.msra.mxu0 0.0
      %1314 = vmatprep.subr.mxu0 0.0
      %1315 = vmatpush1.msra.mxu0 0.0
      %1316 = vmatprep.subr.mxu0 0.0
      %1317 = vmatpush1.msra.mxu0 0.0
      %1318 = vmatprep.subr.mxu0 0.0
      %1319 = vmatpush1.msra.mxu0 0.0
      %1320 = vmatprep.subr.mxu0 0.0
      %1321 = vmatpush1.msra.mxu0 0.0
      %1322 = vmatprep.subr.mxu0 0.0
      %1323 = vmatpush1.msra.mxu0 0.0
      %1324 = vmatprep.subr.mxu0 0.0
      %1325 = vmatpush1.msra.mxu0 0.0
      %1326 = vmatprep.subr.mxu0 0.0
      %1327 = vmatpush1.msra.mxu0 0.0
      %1328 = vmatprep.subr.mxu0 0.0
      %1329 = vmatpush1.msra.mxu0 0.0
      %1330 = vmatprep.subr.mxu0 0.0
      %1331 = vmatpush1.msra.mxu0 0.0
      %1332 = vmatprep.subr.mxu0 0.0
      %1333 = vmatpush1.msra.mxu0 0.0
      %1334 = vmatprep.subr.mxu0 0.0
      %1335 = vmatpush1.msra.mxu0 0.0
      %1336 = vmatprep.subr.mxu0 0.0
      %1337 = vmatpush1.msra.mxu0 %v1306
      %1338 = vmatprep.subr.mxu0 0.0
      %1339 = vmatpush1.msra.mxu0 %v1296
      %1340 = vmatprep.subr.mxu0 0.0
      %1341 = vmatpush2.msra.mxu0 0.0
      %1342 = vmatprep.subr.mxu0 0.0
      %1343 = vmatpush2.msra.mxu0 0.0
      %1344 = vmatprep.subr.mxu0 0.0
      %1345 = vmatpush2.msra.mxu0 0.0
      %1346 = vmatprep.subr.mxu0 0.0
      %1347 = vmatpush2.msra.mxu0 0.0
      %1348 = vmatprep.subr.mxu0 0.0
      %1349 = vmatpush2.msra.mxu0 0.0
      %1350 = vmatprep.subr.mxu0 0.0
      %1351 = vmatpush2.msra.mxu0 0.0
      %1352 = vmatprep.subr.mxu0 0.0
      %1353 = vmatpush2.msra.mxu0 0.0
      %1354 = vmatprep.subr.mxu0 0.0
      %1355 = vmatpush2.msra.mxu0 0.0
      %1356 = vmatprep.subr.mxu0 0.0
      %1357 = vmatpush2.msra.mxu0 0.0
      %1358 = vmatprep.subr.mxu0 0.0
      %1359 = vmatpush2.msra.mxu0 0.0
      %1360 = vmatprep.subr.mxu0 0.0
      %1361 = vmatpush2.msra.mxu0 0.0
      %1362 = vmatprep.subr.mxu0 0.0
      %1363 = vmatpush2.msra.mxu0 0.0
      %1364 = vmatprep.subr.mxu0 0.0
      %1365 = vmatpush2.msra.mxu0 0.0
      %1366 = vmatprep.subr.mxu0 0.0
      %1367 = vmatpush2.msra.mxu0 0.0
      %1368 = vmatprep.subr.mxu0 0.0
      %1369 = vmatpush2.msra.mxu0 0.0
      %1370 = vmatprep.subr.mxu0 0.0
      %1371 = vmatpush2.msra.mxu0 0.0
      %1372 = vmatprep.mubr.f32.mxu0 0.0
      %1373 = vmatmul.mubr.f32.gmra.mxu0 %v1301
      %v1374 = vpop.f32.mrf.mxu0
      %v1375 = vadd.f32 0.0, %v1374
      %v1376 = vpop.f32.mrf.mxu0
      %1377 = vmatprep.mubr.f32.mxu0 0.0
      %1378 = vmatmul.mubr.f32.gmra.mxu0 %v1304
      %v1379 = vpop.f32.mrf.mxu0
      %v1380 = vadd.f32 0.0, %v1379
      %v1381 = vpop.f32.mrf.mxu0
      %1382 = vdwg.mxu0
      %v1383 = vpack.c.bf16 %v1116, %v1111
      %v1384 = vpack.c.bf16 %v1204, %v1199
      %v1385 = vpack.c.bf16 %v1292, %v1287
      %v1386 = vpack.c.bf16 %v1380, %v1375
      %v1387 = vld [vmem:[%s4] sm:$0xf]
      %v1388 = vld [vmem:[%s4 + $0x4] sm:$0xf]
      %v1389 = vld [vmem:[%s4 + $0x8] sm:$0xf]
      %v1390 = vld [vmem:[%s4 + $0xc] sm:$0xf]
      %v1392 = vsel %vm573, %v1383, 0
      %vm1394 = vcmask 1043456
      %v1396 = vsel %vm1394, %v1387, 0
      %1398 = vmatprep.subr.bf16.mxu0 0
      %1399 = vmatpush1.bf16.msra.mxu0 0
      %1400 = vmatprep.subr.bf16.mxu0 0
      %1401 = vmatpush1.bf16.msra.mxu0 0
      %1402 = vmatprep.subr.bf16.mxu0 0
      %1403 = vmatpush1.bf16.msra.mxu0 0
      %1404 = vmatprep.subr.bf16.mxu0 0
      %1405 = vmatpush1.bf16.msra.mxu0 0
      %1406 = vmatprep.subr.bf16.mxu0 0
      %1407 = vmatpush1.bf16.msra.mxu0 0
      %1408 = vmatprep.subr.bf16.mxu0 0
      %1409 = vmatpush1.bf16.msra.mxu0 0
      %1410 = vmatprep.subr.bf16.mxu0 0
      %1411 = vmatpush1.bf16.msra.mxu0 0
      %1412 = vmatprep.subr.bf16.mxu0 0
      %1413 = vmatpush1.bf16.msra.mxu0 %v1396
      %1414 = vmatprep.subr.bf16.mxu0 0
      %1415 = vmatpush2.bf16.msra.mxu0 0
      %1416 = vmatprep.subr.bf16.mxu0 0
      %1417 = vmatpush2.bf16.msra.mxu0 0
      %1418 = vmatprep.subr.bf16.mxu0 0
      %1419 = vmatpush2.bf16.msra.mxu0 0
      %1420 = vmatprep.subr.bf16.mxu0 0
      %1421 = vmatpush2.bf16.msra.mxu0 0
      %1422 = vmatprep.subr.bf16.mxu0 0
      %1423 = vmatpush2.bf16.msra.mxu0 0
      %1424 = vmatprep.subr.bf16.mxu0 0
      %1425 = vmatpush2.bf16.msra.mxu0 0
      %1426 = vmatprep.subr.bf16.mxu0 0
      %1427 = vmatpush2.bf16.msra.mxu0 0
      %1428 = vmatprep.subr.bf16.mxu0 0
      %1429 = vmatpush2.bf16.msra.mxu0 0
      %1430 = vmatprep.mubr.bf16.mxu0 0
      %1431 = vmatmul.mubr.bf16.gmra.mxu0 %v1392
      %v1432 = vpop.f32.mrf.mxu0
      %v1433 = vadd.f32 0.0, %v1432
      %v1434 = vpop.f32.mrf.mxu0
      %v1435 = vpop.f32.mrf.mxu0
      %v1436 = vadd.f32 0.0, %v1435
      %v1437 = vpop.f32.mrf.mxu0
      %1438 = vdwg.mxu0
      %v1440 = vsel %vm573, %v1384, 0
      %v1443 = vsel %vm1394, %v1388, 0
      %1445 = vmatprep.subr.bf16.mxu0 0
      %1446 = vmatpush1.bf16.msra.mxu0 0
      %1447 = vmatprep.subr.bf16.mxu0 0
      %1448 = vmatpush1.bf16.msra.mxu0 0
      %1449 = vmatprep.subr.bf16.mxu0 0
      %1450 = vmatpush1.bf16.msra.mxu0 0
      %1451 = vmatprep.subr.bf16.mxu0 0
      %1452 = vmatpush1.bf16.msra.mxu0 0
      %1453 = vmatprep.subr.bf16.mxu0 0
      %1454 = vmatpush1.bf16.msra.mxu0 0
      %1455 = vmatprep.subr.bf16.mxu0 0
      %1456 = vmatpush1.bf16.msra.mxu0 0
      %1457 = vmatprep.subr.bf16.mxu0 0
      %1458 = vmatpush1.bf16.msra.mxu0 0
      %1459 = vmatprep.subr.bf16.mxu0 0
      %1460 = vmatpush1.bf16.msra.mxu0 %v1443
      %1461 = vmatprep.subr.bf16.mxu0 0
      %1462 = vmatpush2.bf16.msra.mxu0 0
      %1463 = vmatprep.subr.bf16.mxu0 0
      %1464 = vmatpush2.bf16.msra.mxu0 0
      %1465 = vmatprep.subr.bf16.mxu0 0
      %1466 = vmatpush2.bf16.msra.mxu0 0
      %1467 = vmatprep.subr.bf16.mxu0 0
      %1468 = vmatpush2.bf16.msra.mxu0 0
      %1469 = vmatprep.subr.bf16.mxu0 0
      %1470 = vmatpush2.bf16.msra.mxu0 0
      %1471 = vmatprep.subr.bf16.mxu0 0
      %1472 = vmatpush2.bf16.msra.mxu0 0
      %1473 = vmatprep.subr.bf16.mxu0 0
      %1474 = vmatpush2.bf16.msra.mxu0 0
      %1475 = vmatprep.subr.bf16.mxu0 0
      %1476 = vmatpush2.bf16.msra.mxu0 0
      %1477 = vmatprep.mubr.bf16.mxu0 0
      %1478 = vmatmul.mubr.bf16.gmra.mxu0 %v1440
      %v1479 = vpop.f32.mrf.mxu0
      %v1480 = vadd.f32 0.0, %v1479
      %v1481 = vpop.f32.mrf.mxu0
      %v1482 = vpop.f32.mrf.mxu0
      %v1483 = vadd.f32 0.0, %v1482
      %v1484 = vpop.f32.mrf.mxu0
      %1485 = vdwg.mxu0
      %v1487 = vsel %vm573, %v1385, 0
      %v1490 = vsel %vm1394, %v1389, 0
      %1492 = vmatprep.subr.bf16.mxu0 0
      %1493 = vmatpush1.bf16.msra.mxu0 0
      %1494 = vmatprep.subr.bf16.mxu0 0
      %1495 = vmatpush1.bf16.msra.mxu0 0
      %1496 = vmatprep.subr.bf16.mxu0 0
      %1497 = vmatpush1.bf16.msra.mxu0 0
      %1498 = vmatprep.subr.bf16.mxu0 0
      %1499 = vmatpush1.bf16.msra.mxu0 0
      %1500 = vmatprep.subr.bf16.mxu0 0
      %1501 = vmatpush1.bf16.msra.mxu0 0
      %1502 = vmatprep.subr.bf16.mxu0 0
      %1503 = vmatpush1.bf16.msra.mxu0 0
      %1504 = vmatprep.subr.bf16.mxu0 0
      %1505 = vmatpush1.bf16.msra.mxu0 0
      %1506 = vmatprep.subr.bf16.mxu0 0
      %1507 = vmatpush1.bf16.msra.mxu0 %v1490
      %1508 = vmatprep.subr.bf16.mxu0 0
      %1509 = vmatpush2.bf16.msra.mxu0 0
      %1510 = vmatprep.subr.bf16.mxu0 0
      %1511 = vmatpush2.bf16.msra.mxu0 0
      %1512 = vmatprep.subr.bf16.mxu0 0
      %1513 = vmatpush2.bf16.msra.mxu0 0
      %1514 = vmatprep.subr.bf16.mxu0 0
      %1515 = vmatpush2.bf16.msra.mxu0 0
      %1516 = vmatprep.subr.bf16.mxu0 0
      %1517 = vmatpush2.bf16.msra.mxu0 0
      %1518 = vmatprep.subr.bf16.mxu0 0
      %1519 = vmatpush2.bf16.msra.mxu0 0
      %1520 = vmatprep.subr.bf16.mxu0 0
      %1521 = vmatpush2.bf16.msra.mxu0 0
      %1522 = vmatprep.subr.bf16.mxu0 0
      %1523 = vmatpush2.bf16.msra.mxu0 0
      %1524 = vmatprep.mubr.bf16.mxu0 0
      %1525 = vmatmul.mubr.bf16.gmra.mxu0 %v1487
      %v1526 = vpop.f32.mrf.mxu0
      %v1527 = vadd.f32 0.0, %v1526
      %v1528 = vpop.f32.mrf.mxu0
      %v1529 = vpop.f32.mrf.mxu0
      %v1530 = vadd.f32 0.0, %v1529
      %v1531 = vpop.f32.mrf.mxu0
      %1532 = vdwg.mxu0
      %v1534 = vsel %vm573, %v1386, 0
      %v1537 = vsel %vm1394, %v1390, 0
      %1539 = vmatprep.subr.bf16.mxu0 0
      %1540 = vmatpush1.bf16.msra.mxu0 0
      %1541 = vmatprep.subr.bf16.mxu0 0
      %1542 = vmatpush1.bf16.msra.mxu0 0
      %1543 = vmatprep.subr.bf16.mxu0 0
      %1544 = vmatpush1.bf16.msra.mxu0 0
      %1545 = vmatprep.subr.bf16.mxu0 0
      %1546 = vmatpush1.bf16.msra.mxu0 0
      %1547 = vmatprep.subr.bf16.mxu0 0
      %1548 = vmatpush1.bf16.msra.mxu0 0
      %1549 = vmatprep.subr.bf16.mxu0 0
      %1550 = vmatpush1.bf16.msra.mxu0 0
      %1551 = vmatprep.subr.bf16.mxu0 0
      %1552 = vmatpush1.bf16.msra.mxu0 0
      %1553 = vmatprep.subr.bf16.mxu0 0
      %1554 = vmatpush1.bf16.msra.mxu0 %v1537
      %1555 = vmatprep.subr.bf16.mxu0 0
      %1556 = vmatpush2.bf16.msra.mxu0 0
      %1557 = vmatprep.subr.bf16.mxu0 0
      %1558 = vmatpush2.bf16.msra.mxu0 0
      %1559 = vmatprep.subr.bf16.mxu0 0
      %1560 = vmatpush2.bf16.msra.mxu0 0
      %1561 = vmatprep.subr.bf16.mxu0 0
      %1562 = vmatpush2.bf16.msra.mxu0 0
      %1563 = vmatprep.subr.bf16.mxu0 0
      %1564 = vmatpush2.bf16.msra.mxu0 0
      %1565 = vmatprep.subr.bf16.mxu0 0
      %1566 = vmatpush2.bf16.msra.mxu0 0
      %1567 = vmatprep.subr.bf16.mxu0 0
      %1568 = vmatpush2.bf16.msra.mxu0 0
      %1569 = vmatprep.subr.bf16.mxu0 0
      %1570 = vmatpush2.bf16.msra.mxu0 0
      %1571 = vmatprep.mubr.bf16.mxu0 0
      %1572 = vmatmul.mubr.bf16.gmra.mxu0 %v1534
      %v1573 = vpop.f32.mrf.mxu0
      %v1574 = vadd.f32 0.0, %v1573
      %v1575 = vpop.f32.mrf.mxu0
      %v1576 = vpop.f32.mrf.mxu0
      %v1577 = vadd.f32 0.0, %v1576
      %v1578 = vpop.f32.mrf.mxu0
      %1579 = vdwg.mxu0
      %v1580 = vadd.f32 %v1433, %v1480
      %v1581 = vadd.f32 %v1436, %v1483
      %v1582 = vadd.f32 %v1580, %v1527
      %v1583 = vadd.f32 %v1581, %v1530
      %v1584 = vadd.f32 %v1582, %v1574
      %v1585 = vadd.f32 %v1583, %v1577
      %v1586 = vld [vmem:[%s5] sm:$0x1]
      %v1588 = vlaneseq
      %v1589 = vshrl.u32 %v1588, 7
      %v1590 = vsub.s32 0, %v1589
      %v1591 = vrot.slane %v1586, %v1590
      %v1593 = vadd.f32 %v1584, %v1591
      %v1594 = vadd.f32 %v1585, %v1591
      %v1595 = vadd.f32 %v483, %v1593
      %v1596 = vadd.f32 %v484, %v1594
      %v1597 = vld [vmem:[%s6] sm:$0x1]
      %v1598 = vld [vmem:[%s7] sm:$0x1]
      %v1599 = vsel %vm510, %v1595, 0.0
      %1600 = vadd.xlane.f32.xlu0 %v1599
      %v1601 = vpop.xlane.xlu0 %1600
      %vm1602 = vcmask 253952
      %v1603 = vsel %vm1602, %v1596, 0.0
      %1604 = vadd.xlane.f32.xlu0 %v1603
      %v1605 = vpop.xlane.xlu0 %1604
      %v1606 = vrcp.pop 32.0
      %v1607 = vmul.f32 %v1601, %v1606
      %v1608 = vmul.f32 %v1605, %v1606
      %v1609 = vmul.f32 %v1595, %v1595
      %v1610 = vmul.f32 %v1596, %v1596
      %v1611 = vsel %vm510, %v1609, 0.0
      %1612 = vadd.xlane.f32.xlu0 %v1611
      %v1613 = vpop.xlane.xlu0 %1612
      %v1614 = vsel %vm1602, %v1610, 0.0
      %1615 = vadd.xlane.f32.xlu0 %v1614
      %v1616 = vpop.xlane.xlu0 %1615
      %v1617 = vmul.f32 %v1613, %v1606
      %v1618 = vmul.f32 %v1616, %v1606
      %v1619 = vmul.f32 %v1607, %v1607
      %v1620 = vmul.f32 %v1608, %v1608
      %v1621 = vsub.f32 %v1617, %v1619
      %v1622 = vsub.f32 %v1618, %v1620
      %v1623 = vsub.f32 %v1595, %v1607
      %v1624 = vsub.f32 %v1596, %v1608
      %v1625 = vadd.f32 %v1621, 1e-05
      %v1626 = vadd.f32 %v1622, 1e-05
      %v1627 = vrsqrt.pop %v1625
      %v1628 = vrsqrt.pop %v1626
      %v1629 = vmul.f32 %v1623, %v1627
      %v1630 = vmul.f32 %v1624, %v1628
      %v1632 = vlaneseq
      %v1633 = vshrl.u32 %v1632, 7
      %v1634 = vsub.s32 0, %v1633
      %v1635 = vrot.slane %v1597, %v1634
      %v1637 = vmul.f32 %v1629, %v1635
      %v1638 = vmul.f32 %v1630, %v1635
      %v1640 = vlaneseq
      %v1641 = vshrl.u32 %v1640, 7
      %v1642 = vsub.s32 0, %v1641
      %v1643 = vrot.slane %v1598, %v1642
      %v1645 = vadd.f32 %v1637, %v1643
      %v1646 = vadd.f32 %v1638, %v1643
      %v1647 = vpack.c.bf16 %v1646, %v1645
      %v1648 = vld [vmem:[%s8] sm:$0xf]
      %v1649 = vld [vmem:[%s8 + $0x4] sm:$0xf]
      %v1650 = vld [vmem:[%s8 + $0x8] sm:$0xf]
      %v1651 = vld [vmem:[%s8 + $0xc] sm:$0xf]
      %v1652 = vld [vmem:[%s9] sm:$0x1]
      %v1654 = vlaneseq
      %v1655 = vshrl.u32 %v1654, 7
      %v1656 = vsub.s32 0, %v1655
      %v1657 = vrot.slane %v1652, %v1656
      %v1663 = vunpack.c.l.b16 %v1648
      %v1664 = vunpack.c.l.b16 %v1649
      %v1665 = vunpack.c.l.b16 %v1650
      %v1666 = vunpack.c.l.b16 %v1651
      %v1667 = vpack.c.b16 %v1664, %v1663
      %v1668 = vpack.c.b16 %v1666, %v1665
      %v1672 = vsel %vm510, %v1647, 0
      %1674 = vmatprep.subr.bf16.mxu0 0
      %1675 = vmatpush1.bf16.msra.mxu0 0
      %1676 = vmatprep.subr.bf16.mxu0 0
      %1677 = vmatpush1.bf16.msra.mxu0 0
      %1678 = vmatprep.subr.bf16.mxu0 0
      %1679 = vmatpush1.bf16.msra.mxu0 0
      %1680 = vmatprep.subr.bf16.mxu0 0
      %1681 = vmatpush1.bf16.msra.mxu0 0
      %1682 = vmatprep.subr.bf16.mxu0 0
      %1683 = vmatpush1.bf16.msra.mxu0 0
      %1684 = vmatprep.subr.bf16.mxu0 0
      %1685 = vmatpush1.bf16.msra.mxu0 0
      %1686 = vmatprep.subr.bf16.mxu0 0
      %1687 = vmatpush1.bf16.msra.mxu0 %v1668
      %1688 = vmatprep.subr.bf16.mxu0 0
      %1689 = vmatpush1.bf16.msra.mxu0 %v1667
      %1690 = vmatprep.subr.bf16.mxu0 0
      %1691 = vmatpush2.bf16.msra.mxu0 0
      %1692 = vmatprep.subr.bf16.mxu0 0
      %1693 = vmatpush2.bf16.msra.mxu0 0
      %1694 = vmatprep.subr.bf16.mxu0 0
      %1695 = vmatpush2.bf16.msra.mxu0 0
      %1696 = vmatprep.subr.bf16.mxu0 0
      %1697 = vmatpush2.bf16.msra.mxu0 0
      %1698 = vmatprep.subr.bf16.mxu0 0
      %1699 = vmatpush2.bf16.msra.mxu0 0
      %1700 = vmatprep.subr.bf16.mxu0 0
      %1701 = vmatpush2.bf16.msra.mxu0 0
      %1702 = vmatprep.subr.bf16.mxu0 0
      %1703 = vmatpush2.bf16.msra.mxu0 0
      %1704 = vmatprep.subr.bf16.mxu0 0
      %1705 = vmatpush2.bf16.msra.mxu0 0
      %1706 = vmatprep.mubr.bf16.mxu0 0
      %1707 = vmatmul.mubr.bf16.gmra.mxu0 %v1672
      %v1708 = vpop.f32.mrf.mxu0
      %v1709 = vadd.f32 %v1657, %v1708
      %v1710 = vpop.f32.mrf.mxu0
      %v1711 = vpop.f32.mrf.mxu0
      %v1712 = vadd.f32 %v1657, %v1711
      %v1713 = vpop.f32.mrf.mxu0
      %1714 = vdwg.mxu0
      %v1715 = vmul.f32 %v1709, 0.5
      %v1716 = vmul.f32 %v1712, 0.5
      %v1717 = vmul.f32 %v1709, 0.70710677
      %v1718 = vmul.f32 %v1712, 0.70710677
      %v1719 = verf.f32.pop %v1717
      %v1720 = verf.f32.pop %v1718
      %v1721 = vadd.f32 %v1719, 1.0
      %v1722 = vadd.f32 %v1720, 1.0
      %v1723 = vmul.f32 %v1715, %v1721
      %v1724 = vmul.f32 %v1716, %v1722
      %v1725 = vpack.c.bf16 %v1724, %v1723
      %v1726 = vld [vmem:[%s10] sm:$0xf]
      %v1727 = vld [vmem:[%s10 + $0x4] sm:$0xf]
      %v1728 = vld [vmem:[%s10 + $0x8] sm:$0xf]
      %v1729 = vld [vmem:[%s10 + $0xc] sm:$0xf]
      %v1730 = vld [vmem:[%s10 + $0x10] sm:$0xf]
      %v1731 = vld [vmem:[%s10 + $0x14] sm:$0xf]
      %v1732 = vld [vmem:[%s10 + $0x18] sm:$0xf]
      %v1733 = vld [vmem:[%s10 + $0x1c] sm:$0xf]
      %v1734 = vld [vmem:[%s11] sm:$0x1]
      %v1736 = vlaneseq
      %v1737 = vshrl.u32 %v1736, 7
      %v1738 = vsub.s32 0, %v1737
      %v1739 = vrot.slane %v1734, %v1738
      %v1749 = vunpack.c.l.b16 %v1726
      %v1750 = vunpack.c.l.b16 %v1727
      %v1751 = vunpack.c.l.b16 %v1728
      %v1752 = vunpack.c.l.b16 %v1729
      %v1753 = vunpack.c.l.b16 %v1730
      %v1754 = vunpack.c.l.b16 %v1731
      %v1755 = vunpack.c.l.b16 %v1732
      %v1756 = vunpack.c.l.b16 %v1733
      %v1757 = vpack.c.b16 %v1750, %v1749
      %v1758 = vpack.c.b16 %v1752, %v1751
      %v1759 = vpack.c.b16 %v1754, %v1753
      %v1760 = vpack.c.b16 %v1756, %v1755
      %vm1765 = vcmask 523264
      %v1767 = vsel %vm1765, %v1725, 0
      %1769 = vmatprep.subr.bf16.mxu0 0
      %1770 = vmatpush1.bf16.msra.mxu0 0
      %1771 = vmatprep.subr.bf16.mxu0 0
      %1772 = vmatpush1.bf16.msra.mxu0 0
      %1773 = vmatprep.subr.bf16.mxu0 0
      %1774 = vmatpush1.bf16.msra.mxu0 0
      %1775 = vmatprep.subr.bf16.mxu0 0
      %1776 = vmatpush1.bf16.msra.mxu0 0
      %1777 = vmatprep.subr.bf16.mxu0 0
      %1778 = vmatpush1.bf16.msra.mxu0 %v1760
      %1779 = vmatprep.subr.bf16.mxu0 0
      %1780 = vmatpush1.bf16.msra.mxu0 %v1759
      %1781 = vmatprep.subr.bf16.mxu0 0
      %1782 = vmatpush1.bf16.msra.mxu0 %v1758
      %1783 = vmatprep.subr.bf16.mxu0 0
      %1784 = vmatpush1.bf16.msra.mxu0 %v1757
      %1785 = vmatprep.subr.bf16.mxu0 0
      %1786 = vmatpush2.bf16.msra.mxu0 0
      %1787 = vmatprep.subr.bf16.mxu0 0
      %1788 = vmatpush2.bf16.msra.mxu0 0
      %1789 = vmatprep.subr.bf16.mxu0 0
      %1790 = vmatpush2.bf16.msra.mxu0 0
      %1791 = vmatprep.subr.bf16.mxu0 0
      %1792 = vmatpush2.bf16.msra.mxu0 0
      %1793 = vmatprep.subr.bf16.mxu0 0
      %1794 = vmatpush2.bf16.msra.mxu0 0
      %1795 = vmatprep.subr.bf16.mxu0 0
      %1796 = vmatpush2.bf16.msra.mxu0 0
      %1797 = vmatprep.subr.bf16.mxu0 0
      %1798 = vmatpush2.bf16.msra.mxu0 0
      %1799 = vmatprep.subr.bf16.mxu0 0
      %1800 = vmatpush2.bf16.msra.mxu0 0
      %1801 = vmatprep.mubr.bf16.mxu0 0
      %1802 = vmatmul.mubr.bf16.gmra.mxu0 %v1767
      %v1803 = vpop.f32.mrf.mxu0
      %v1804 = vadd.f32 %v1739, %v1803
      %v1805 = vpop.f32.mrf.mxu0
      %v1806 = vpop.f32.mrf.mxu0
      %v1807 = vadd.f32 %v1739, %v1806
      %v1808 = vpop.f32.mrf.mxu0
      %1809 = vdwg.mxu0
      %v1810 = vadd.f32 %v1645, %v1804
      %v1811 = vadd.f32 %v1646, %v1807
      %v1812 = vld [vmem:[%s12] sm:$0x1]
      %v1813 = vld [vmem:[%s13] sm:$0x1]
      %v1814 = vsel %vm510, %v1810, 0.0
      %1815 = vadd.xlane.f32.xlu0 %v1814
      %v1816 = vpop.xlane.xlu0 %1815
      %v1817 = vsel %vm1602, %v1811, 0.0
      %1818 = vadd.xlane.f32.xlu0 %v1817
      %v1819 = vpop.xlane.xlu0 %1818
      %v1820 = vmul.f32 %v1816, %v1606
      %v1821 = vmul.f32 %v1819, %v1606
      %v1822 = vmul.f32 %v1810, %v1810
      %v1823 = vmul.f32 %v1811, %v1811
      %v1824 = vsel %vm510, %v1822, 0.0
      %1825 = vadd.xlane.f32.xlu0 %v1824
      %v1826 = vpop.xlane.xlu0 %1825
      %v1827 = vsel %vm1602, %v1823, 0.0
      %1828 = vadd.xlane.f32.xlu0 %v1827
      %v1829 = vpop.xlane.xlu0 %1828
      %v1830 = vmul.f32 %v1826, %v1606
      %v1831 = vmul.f32 %v1829, %v1606
      %v1832 = vmul.f32 %v1820, %v1820
      %v1833 = vmul.f32 %v1821, %v1821
      %v1834 = vsub.f32 %v1830, %v1832
      %v1835 = vsub.f32 %v1831, %v1833
      %v1836 = vsub.f32 %v1810, %v1820
      %v1837 = vsub.f32 %v1811, %v1821
      %v1838 = vadd.f32 %v1834, 1e-05
      %v1839 = vadd.f32 %v1835, 1e-05
      %v1840 = vrsqrt.pop %v1838
      %v1841 = vrsqrt.pop %v1839
      %v1842 = vmul.f32 %v1836, %v1840
      %v1843 = vmul.f32 %v1837, %v1841
      %v1845 = vlaneseq
      %v1846 = vshrl.u32 %v1845, 7
      %v1847 = vsub.s32 0, %v1846
      %v1848 = vrot.slane %v1812, %v1847
      %v1850 = vmul.f32 %v1842, %v1848
      %v1851 = vmul.f32 %v1843, %v1848
      %v1853 = vlaneseq
      %v1854 = vshrl.u32 %v1853, 7
      %v1855 = vsub.s32 0, %v1854
      %v1856 = vrot.slane %v1813, %v1855
      %v1858 = vadd.f32 %v1850, %v1856
      %v1859 = vadd.f32 %v1851, %v1856
      %1860 = vst.msk [vmem:[%s481] sm:$0xff] %vm510, %v1858
      %1861 = vst.msk [vmem:[%s481 + $0x8] sm:$0x1] %vm1602, %v1859
      %p1862 = scmp.lt.s32.totalorder %s25, 1
      %s1863 = scalar_select %p1862, %s25, 1
      %s1864 = smul.addr %s1863, 2
      %s1865 = smul.addr %s1864, 8
      %s1866 = scalar_lea.vmem %s14, %s1865
      // Predicated region
      $region77: #{_lambda_.5} parent=75 // pred_check
        %p1867 = pneg %p347
      $region78: #{_lambda_.5} parent=75 // pred_check_branch
        %1869 = sbr.rel (%p1867) target = $region80
      $region79: #{_lambda_.5} parent=75 // pred_region
        _
      $region80: #{_lambda_.5} parent=75 // pred_fallthru
        _
    $region76: #{_lambda_.5} parent=5 // pred_fallthru
      _
    %p1870 = scmp.le.s32.totalorder 2, %s20
    // Predicated region
    $region81: #{_lambda_.5} parent=5 // pred_check
      %p1871 = pneg %p1870
    $region82: #{_lambda_.5} parent=5 // pred_check_branch
      %1873 = sbr.rel (%p1871) target = $region84
    $region83: #{_lambda_.5} parent=5 // pred_region
      %s1874 = ssub.s32 %s20, 2
      // Predicated region
      $region85: #{_lambda_.5} parent=83 // pred_check
        %p1875 = pneg %p353
      $region86: #{_lambda_.5} parent=83 // pred_check_branch
        %1877 = sbr.rel (%p1875) target = $region88
      $region87: #{_lambda_.5} parent=83 // pred_region
        %p1878 = scmp.lt.s32.totalorder %s26, 1
        %s1879 = scalar_select %p1878, %s26, 1
        %s1880 = smul.addr %s1879, 2
        %s1881 = smul.addr %s1880, 8
        %s1882 = scalar_lea.vmem %s14, %s1881
      $region88: #{_lambda_.5} parent=83 // pred_fallthru
        _
    $region84: #{_lambda_.5} parent=5 // pred_fallthru
      _
  $region6: #{_lambda_.5} parent=0 // loop_footer
    %s24 = sadd.s32 1, %s20
  $region7: #{_lambda_.5} parent=0 // loop_footer_branch
    %19 = sbr.rel target = $region3
  $region8: #{_lambda_.5} parent=0 // loop_exit
    _

</llo_original>
